<compile_context>
chip_gen: v6e
topology: v6e:2x2x1
jax: 0.10.0
libtpu: 0.0.40
codegen_flags: <defaults>
</compile_context>

<pallas_src>
import functools

import jax
import jax.numpy as jnp
from jax.experimental import pallas as pl
from jax.experimental.pallas import tpu as pltpu

_LANES = 128
_SUBLANES = 8
_ROW_ALIGN = 16          # keeps sublane tiling legal for both f32 and bf16 slabs


# -----------------------------------------------------------------------------
# Kernel
# -----------------------------------------------------------------------------
def _fused_wmse_kernel(alpha_ref, invn_ref, stacked_ref, target_ref,
                       out_ref, acc_ref):
    """Fused alpha-weighted-sum + per-row-scaled squared-error accumulation.

    alpha_ref   : VMEM (tr, M)       f32      per-row alphas (row -> its param's alphas)
    invn_ref    : VMEM (tr, 1)       f32      per-row 1/numel(param) (0 on pad rows)
    stacked_ref : VMEM (M, tr, 128)  f32/bf16 row tile of all M model copies
    target_ref  : VMEM (tr, 128)     f32      row tile of the target parameters
    out_ref     : VMEM (1, 8, 128)   f32      lane-dense per-split partial sums
    acc_ref     : VMEM (8, 128)      f32      resident vreg-shaped accumulator
    """
    i = pl.program_id(1)               # row-tile axis ("arbitrary", reduction)
    nt = pl.num_programs(1)

    @pl.when(i == 0)
    def _():
        acc_ref[...] = jnp.zeros_like(acc_ref)

    num_models = stacked_ref.shape[0]
    tr = target_ref.shape[0]

    alpha = alpha_ref[...]                                        # (tr, M)
    # Unrolled per-model weighted sum: pure VPU (sublane-broadcast per model).
    pred = alpha[:, 0:1] * stacked_ref[0].astype(jnp.float32)
    for m in range(1, num_models):
        pred = pred + alpha[:, m:m + 1] * stacked_ref[m].astype(jnp.float32)

    diff = pred - target_ref[...]
    sq = diff * diff * invn_ref[...]                              # MSE "mean" scale
    # Fold (tr,128) into the resident (8,128) accumulator with vreg+vreg adds.
    acc_ref[...] += jnp.sum(
        sq.reshape(tr // _SUBLANES, _SUBLANES, _LANES), axis=0)

    @pl.when(i == nt - 1)
    def _():
        # One unmasked lane-dense 4 KiB store per split; scalar reduce in JAX.
        out_ref[...] = acc_ref[...].reshape(1, _SUBLANES, _LANES)


# -----------------------------------------------------------------------------
# Generation-aware configuration
# -----------------------------------------------------------------------------
_GEN_CONFIG = {
    # preferred tile, split count (megacore), VMEM budget for the clamp,
    # optional raised scoped-VMEM limit.
    "v5e":     dict(tile_rows=1024, num_splits=1, vmem_budget=14 << 20, vmem_limit=None),
    "v6e":     dict(tile_rows=2048, num_splits=1, vmem_budget=28 << 20, vmem_limit=None),
    "v7x":     dict(tile_rows=4096, num_splits=2, vmem_budget=34 << 20, vmem_limit=44 << 20),
    "unknown": dict(tile_rows=1024, num_splits=1, vmem_budget=14 << 20, vmem_limit=None),
}


def _detect_generation():
    try:
        kind = jax.devices()[0].device_kind.lower()
    except Exception:
        return "unknown"
    if "v5 lite" in kind or "v5lite" in kind or "v5e" in kind:
        return "v5e"
    if "v6" in kind:
        return "v6e"
    if "v7" in kind or "7x" in kind or "tpu7" in kind:
        return "v7x"
    return "unknown"


def _per_row_vmem_bytes(num_models, stacked_itemsize):
    db = 2                                              # double-buffered inputs
    stacked_b = num_models * _LANES * stacked_itemsize * db
    target_b = _LANES * 4 * db
    side_b = 2 * _LANES * 4 * db                        # (tr,M)/(tr,1) lane-padded in VMEM
    interm_b = 4 * _LANES * 4                           # pred/diff/sq/cast temporaries
    return stacked_b + target_b + side_b + interm_b


# -----------------------------------------------------------------------------
# Slab preparation (constant across alpha updates -- cache it)
# -----------------------------------------------------------------------------
def prepare_slabs(model_params, x_named_params, *, tile_rows=None,
                  num_splits=None, use_bf16=False, generation=None):
    """Build lane-dense slabs + per-row metadata.

    model_params   : dict name -> list of M arrays (one per model copy)
    x_named_params : list of (name, array) -- the target parameters
    use_bf16       : store the stacked slab in bfloat16 (opt-in: looser numerics)
    """
    gen = generation if generation is not None else _detect_generation()
    cfg = _GEN_CONFIG.get(gen, _GEN_CONFIG["unknown"])

    names = [name for name, _ in x_named_params]
    num_models = len(model_params[names[0]])
    for name in names:
        assert len(model_params[name]) == num_models, "all params need the same M"
    stacked_dtype = jnp.bfloat16 if use_bf16 else jnp.float32
    stacked_itemsize = 2 if use_bf16 else 4

    # --- per-parameter flatten + pad only to whole (8,128) rows -------------
    row_quant = _SUBLANES * _LANES              # 1024 elements
    stacked_chunks, target_chunks = [], []
    row_pid, inv_n = [], []
    for p_idx, (name, p) in enumerate(x_named_params):
        n = int(p.size)
        pad = (-n) % row_quant
        rows_p = (n + pad) // _LANES
        tgt = jnp.pad(jnp.asarray(p, jnp.float32).reshape(-1), (0, pad))
        target_chunks.append(tgt.reshape(rows_p, _LANES))
        per_model = [
            jnp.pad(jnp.asarray(w, jnp.float32).reshape(-1), (0, pad))
            .reshape(rows_p, _LANES).astype(stacked_dtype)
            for w in model_params[name]
        ]
        stacked_chunks.append(jnp.stack(per_model, axis=0))
        row_pid += [p_idx] * rows_p
        inv_n.append(1.0 / n)

    stacked = jnp.concatenate(stacked_chunks, axis=1)       # (M, R0, 128)
    target = jnp.concatenate(target_chunks, axis=0)         # (R0, 128)
    rows0 = target.shape[0]

    inv_n_arr = jnp.asarray(inv_n, jnp.float32)
    row_pid_arr = jnp.asarray(row_pid, jnp.int32)
    invn_rows = jnp.take(inv_n_arr, row_pid_arr)[:, None]   # (R0, 1)

    # --- choose tiling (generation-aware, VMEM-budgeted) ---------------------
    per_row = _per_row_vmem_bytes(num_models, stacked_itemsize)
    tr_max = max(_ROW_ALIGN,
                 (cfg["vmem_budget"] // per_row) // _ROW_ALIGN * _ROW_ALIGN)
    ns = int(num_splits) if num_splits is not None else cfg["num_splits"]

    rows_aligned = ((rows0 + _ROW_ALIGN - 1) // _ROW_ALIGN) * _ROW_ALIGN
    if tile_rows is None and rows_aligned <= tr_max:
        # Fast path: whole slab (double-buffered) fits the VMEM budget ->
        # single grid step, no per-step overhead, no zero-tile padding.
        tr = rows_aligned
        ns = 1
    else:
        want = int(tile_rows) if tile_rows is not None else cfg["tile_rows"]
        tr = max(_ROW_ALIGN, (min(want, tr_max) // _ROW_ALIGN) * _ROW_ALIGN)
        if tr >= rows_aligned:
            tr = rows_aligned
            ns = 1

    rows_total = ((rows0 + tr * ns - 1) // (tr * ns)) * (tr * ns)
    pad_rows = rows_total - rows0
    if pad_rows:
        # Zero rows with inv_n = 0 -> contribute exactly 0 to the loss.
        stacked = jnp.pad(stacked, ((0, 0), (0, pad_rows), (0, 0)))
        target = jnp.pad(target, ((0, pad_rows), (0, 0)))
        invn_rows = jnp.pad(invn_rows, ((0, pad_rows), (0, 0)))
        row_pid_arr = jnp.pad(row_pid_arr, (0, pad_rows))

    return dict(
        names=names,
        num_models=num_models,
        tile_rows=int(tr),
        num_splits=int(ns),
        vmem_limit_bytes=cfg["vmem_limit"],
        stacked=stacked,
        target=target,
        row_pid=row_pid_arr,
        invn_rows=invn_rows,
    )


# -----------------------------------------------------------------------------
# Fused pallas_call (single launch for all parameters)
# -----------------------------------------------------------------------------
@functools.partial(
    jax.jit, static_argnames=("tile_rows", "num_splits", "vmem_limit_bytes"))
def _fused_call(alphas_mat, row_pid, invn_rows, stacked, target,
                *, tile_rows, num_splits, vmem_limit_bytes):
    num_models, rows_total, _ = stacked.shape
    tiles_total = rows_total // tile_rows
    tiles_per_split = tiles_total // num_splits

    # Per-row alpha slab (R, M): lets one row tile span several parameters and
    # removes dynamic SMEM scalar gathers from the hot loop.  Tiny (~M/128 of
    # the target bytes), rebuilt per call since alphas are the trainables.
    alpha_rows = jnp.take(alphas_mat, row_pid, axis=0)

    cp_kwargs = dict(dimension_semantics=("parallel", "arbitrary"))
    if vmem_limit_bytes is not None:
        cp_kwargs["vmem_limit_bytes"] = int(vmem_limit_bytes)

    partials = pl.pallas_call(
        _fused_wmse_kernel,
        out_shape=jax.ShapeDtypeStruct((num_splits, _SUBLANES, _LANES),
                                       jnp.float32),
        grid_spec=pltpu.PrefetchScalarGridSpec(
            num_scalar_prefetch=0,
            grid=(num_splits, tiles_per_split),
            in_specs=[
                pl.BlockSpec((tile_rows, num_models),
                             lambda c, i: (c * tiles_per_split + i, 0)),
                pl.BlockSpec((tile_rows, 1),
                             lambda c, i: (c * tiles_per_split + i, 0)),
                pl.BlockSpec((num_models, tile_rows, _LANES),
                             lambda c, i: (0, c * tiles_per_split + i, 0)),
                pl.BlockSpec((tile_rows, _LANES),
                             lambda c, i: (c * tiles_per_split + i, 0)),
            ],
            out_specs=pl.BlockSpec((1, _SUBLANES, _LANES),
                                   lambda c, i: (c, 0, 0)),
            scratch_shapes=[pltpu.VMEM((_SUBLANES, _LANES), jnp.float32)],
        ),
        compiler_params=pltpu.CompilerParams(**cp_kwargs),
    )(alpha_rows, invn_rows, stacked, target)

    return jnp.sum(partials)


def linear_regression_forward(prepared, alphas):
    """Pallas equivalent of LinearRegressionModel.forward_on_weights.

    prepared : output of prepare_slabs (cache it; model params are constants)
    alphas   : dict name -> (M,) float32 (the trainable parameters)
    """
    alphas_mat = jnp.stack(
        [jnp.asarray(alphas[name], jnp.float32) for name in prepared["names"]],
        axis=0)                                             # (P, M), tiny
    return _fused_call(alphas_mat, prepared["row_pid"], prepared["invn_rows"],
                       prepared["stacked"], prepared["target"],
                       tile_rows=prepared["tile_rows"],
                       num_splits=prepared["num_splits"],
                       vmem_limit_bytes=prepared["vmem_limit_bytes"])


# -----------------------------------------------------------------------------
# Demo / self-test
# -----------------------------------------------------------------------------
if __name__ == "__main__":
    key = jax.random.PRNGKey(0)

    # Synthetic "models": M=3 models sharing the same parameter names/shapes.
    # One larger parameter so at least one parameter spans multiple row tiles.
    param_shapes = {
        "conv1.weight": (4, 4, 3, 3),
        "fc.weight": (8, 32),
        "fc.bias": (8,),
        "embed.weight": (300, 257),
    }
    num_models = 3

    model_params = {name: [] for name in param_shapes}
    for _ in range(num_models):
        for name, shape in param_shapes.items():
            key, sub = jax.random.split(key)
            model_params[name].append(
                jax.random.normal(sub, shape, dtype=jnp.float32) * 0.1)

    # The module initializes alphas to ones; use non-trivial values here so the
    # per-parameter alpha lookup is genuinely exercised.
    alphas = {}
    for name in param_shapes:
        key, sub = jax.random.split(key)
        alphas[name] = jax.random.normal(sub, (num_models,), dtype=jnp.float32)

    # x: named parameters of a "target" network.
    x_named = []
    for name, shape in param_shapes.items():
        key, sub = jax.random.split(key)
        x_named.append(
            (name, jax.random.normal(sub, shape, dtype=jnp.float32) * 0.1))

    # Pure-JAX reference (mirrors the PyTorch forward exactly).
    ref = jnp.float32(0.0)
    for name, p in x_named:
        stacked = jnp.stack(model_params[name], axis=0)
        a = alphas[name].reshape((-1,) + (1,) * (stacked.ndim - 1))
        new_p = (a * stacked).sum(axis=0)
        ref = ref + jnp.mean((new_p - p) ** 2)
    ref = jax.block_until_ready(ref)

    # 1) Auto config: at this scale the whole slab fits in VMEM -> single-step
    #    fast path (grid (1,1), no per-step overhead).
    prepared = prepare_slabs(model_params, x_named)
    loss = jax.block_until_ready(linear_regression_forward(prepared, alphas))
    assert jnp.allclose(loss, ref, rtol=1e-4, atol=1e-6), (loss, ref)

    # 2) Force the multi-tile grid path (small tile + split axis) so the
    #    pipelined accumulator code path is exercised too.
    prepared_grid = prepare_slabs(model_params, x_named,
                                  tile_rows=64, num_splits=2)
    loss_g = jax.block_until_ready(
        linear_regression_forward(prepared_grid, alphas))
    assert jnp.allclose(loss_g, ref, rtol=1e-4, atol=1e-6), (loss_g, ref)

    # 3) Opt-in bf16 stacked slab (bandwidth saver; looser numerics).
    prepared_bf16 = prepare_slabs(model_params, x_named,
                                  tile_rows=64, num_splits=1, use_bf16=True)
    loss_b = jax.block_until_ready(
        linear_regression_forward(prepared_bf16, alphas))
    assert jnp.allclose(loss_b, ref, rtol=5e-2, atol=1e-4), (loss_b, ref)

    print("KERNEL_OK")
</pallas_src>

<mosaic_0001>
module attributes {stable_mosaic.version = 11 : i64} {
  func.func @_fused_wmse_kernel(%arg0: i32, %arg1: i32, %arg2: memref<640x3xf32, #tpu.memory_space<vmem>>, %arg3: memref<640x1xf32, #tpu.memory_space<vmem>>, %arg4: memref<3x640x128xf32, #tpu.memory_space<vmem>>, %arg5: memref<640x128xf32, #tpu.memory_space<vmem>>, %arg6: memref<1x8x128xf32, #tpu.memory_space<vmem>>, %arg7: memref<8x128xf32, #tpu.memory_space<vmem>>) attributes {dimension_semantics = [#tpu.dimension_semantics<parallel>, #tpu.dimension_semantics<arbitrary>], iteration_bounds = array<i64: 1, 1>, scalar_prefetch = 0 : i64, scratch_operands = 1 : i64, tpu.core_type = #tpu.core_type<tc>, window_params = [{transform_indices = @transform_0, window_bounds = array<i64: 640, 3>}, {transform_indices = @transform_1, window_bounds = array<i64: 640, 1>}, {transform_indices = @transform_2, window_bounds = array<i64: 3, 640, 128>}, {transform_indices = @transform_3, window_bounds = array<i64: 640, 128>}, {transform_indices = @transform_4, window_bounds = array<i64: 1, 8, 128>}]} {
    %c0_i32 = arith.constant 0 : i32
    %0 = arith.cmpi eq, %arg1, %c0_i32 : i32
    %1 = arith.extui %0 : i1 to i32
    %c0_i32_0 = arith.constant 0 : i32
    %2 = arith.cmpi ne, %1, %c0_i32_0 : i32
    scf.if %2 {
      %cst_19 = arith.constant 0.000000e+00 : f32
      %35 = vector.broadcast %cst_19 : f32 to vector<8x128xf32>
      %c0_20 = arith.constant 0 : index
      %c0_21 = arith.constant 0 : index
      %36 = vector.load %arg7[%c0_20, %c0_21] : memref<8x128xf32, #tpu.memory_space<vmem>>, vector<8x128xf32>
      tpu.vector_store %arg7[%c0_20, %c0_21], %35 {strides = array<i32>} : memref<8x128xf32, #tpu.memory_space<vmem>>, vector<8x128xf32>,
    } else {
    }
    %c0 = arith.constant 0 : index
    %c0_1 = arith.constant 0 : index
    %3 = vector.load %arg2[%c0, %c0_1] : memref<640x3xf32, #tpu.memory_space<vmem>>, vector<640x3xf32>
    %4 = vector.extract_strided_slice %3 {offsets = [0, 0], sizes = [640, 1], strides = [1, 1]} : vector<640x3xf32> to vector<640x1xf32>
    %c0_2 = arith.constant 0 : index
    %c0_3 = arith.constant 0 : index
    %c0_4 = arith.constant 0 : index
    %5 = vector.load %arg4[%c0_2, %c0_3, %c0_4] : memref<3x640x128xf32, #tpu.memory_space<vmem>>, vector<1x640x128xf32>
    %6 = vector.shape_cast %5 : vector<1x640x128xf32> to vector<640x128xf32>
    %7 = vector.broadcast %4 : vector<640x1xf32> to vector<640x128xf32>
    %8 = arith.mulf %7, %6 : vector<640x128xf32>
    %9 = vector.extract_strided_slice %3 {offsets = [0, 1], sizes = [640, 1], strides = [1, 1]} : vector<640x3xf32> to vector<640x1xf32>
    %c1 = arith.constant 1 : index
    %c0_5 = arith.constant 0 : index
    %c0_6 = arith.constant 0 : index
    %10 = vector.load %arg4[%c1, %c0_5, %c0_6] : memref<3x640x128xf32, #tpu.memory_space<vmem>>, vector<1x640x128xf32>
    %11 = vector.shape_cast %10 : vector<1x640x128xf32> to vector<640x128xf32>
    %12 = vector.broadcast %9 : vector<640x1xf32> to vector<640x128xf32>
    %13 = arith.mulf %12, %11 : vector<640x128xf32>
    %14 = arith.addf %8, %13 : vector<640x128xf32>
    %15 = vector.extract_strided_slice %3 {offsets = [0, 2], sizes = [640, 1], strides = [1, 1]} : vector<640x3xf32> to vector<640x1xf32>
    %c2 = arith.constant 2 : index
    %c0_7 = arith.constant 0 : index
    %c0_8 = arith.constant 0 : index
    %16 = vector.load %arg4[%c2, %c0_7, %c0_8] : memref<3x640x128xf32, #tpu.memory_space<vmem>>, vector<1x640x128xf32>
    %17 = vector.shape_cast %16 : vector<1x640x128xf32> to vector<640x128xf32>
    %18 = vector.broadcast %15 : vector<640x1xf32> to vector<640x128xf32>
    %19 = arith.mulf %18, %17 : vector<640x128xf32>
    %20 = arith.addf %14, %19 : vector<640x128xf32>
    %c0_9 = arith.constant 0 : index
    %c0_10 = arith.constant 0 : index
    %21 = vector.load %arg5[%c0_9, %c0_10] : memref<640x128xf32, #tpu.memory_space<vmem>>, vector<640x128xf32>
    %22 = arith.subf %20, %21 : vector<640x128xf32>
    %23 = arith.mulf %22, %22 : vector<640x128xf32>
    %c0_11 = arith.constant 0 : index
    %c0_12 = arith.constant 0 : index
    %24 = vector.load %arg3[%c0_11, %c0_12] : memref<640x1xf32, #tpu.memory_space<vmem>>, vector<640x1xf32>
    %25 = vector.broadcast %24 : vector<640x1xf32> to vector<640x128xf32>
    %26 = arith.mulf %23, %25 : vector<640x128xf32>
    %c0_13 = arith.constant 0 : index
    %c0_14 = arith.constant 0 : index
    %27 = vector.load %arg7[%c0_13, %c0_14] : memref<8x128xf32, #tpu.memory_space<vmem>>, vector<8x128xf32>
    %28 = vector.shape_cast %26 : vector<640x128xf32> to vector<80x8x128xf32>
    %cst = arith.constant dense<0.000000e+00> : vector<8x128xf32>
    %29 = vector.multi_reduction <add>, %28, %cst [0] : vector<80x8x128xf32> to vector<8x128xf32>
    %30 = arith.addf %27, %29 : vector<8x128xf32>
    %c0_15 = arith.constant 0 : index
    %c0_16 = arith.constant 0 : index
    %31 = vector.load %arg7[%c0_15, %c0_16] : memref<8x128xf32, #tpu.memory_space<vmem>>, vector<8x128xf32>
    tpu.vector_store %arg7[%c0_15, %c0_16], %30 {strides = array<i32>} : memref<8x128xf32, #tpu.memory_space<vmem>>, vector<8x128xf32>,
    %c0_i32_17 = arith.constant 0 : i32
    %32 = arith.cmpi eq, %arg1, %c0_i32_17 : i32
    %33 = arith.extui %32 : i1 to i32
    %c0_i32_18 = arith.constant 0 : i32
    %34 = arith.cmpi ne, %33, %c0_i32_18 : i32
    scf.if %34 {
      %c0_19 = arith.constant 0 : index
      %c0_20 = arith.constant 0 : index
      %35 = vector.load %arg7[%c0_19, %c0_20] : memref<8x128xf32, #tpu.memory_space<vmem>>, vector<8x128xf32>
      %36 = vector.shape_cast %35 : vector<8x128xf32> to vector<1x8x128xf32>
      %c0_21 = arith.constant 0 : index
      %c0_22 = arith.constant 0 : index
      %c0_23 = arith.constant 0 : index
      %37 = vector.load %arg6[%c0_21, %c0_22, %c0_23] : memref<1x8x128xf32, #tpu.memory_space<vmem>>, vector<1x8x128xf32>
      tpu.vector_store %arg6[%c0_21, %c0_22, %c0_23], %36 {strides = array<i32>} : memref<1x8x128xf32, #tpu.memory_space<vmem>>, vector<1x8x128xf32>,
    } else {
    }
    return
  }
  func.func @transform_0(%arg0: i32, %arg1: i32) -> (i32, i32) {
    %c1_i32 = arith.constant 1 : i32
    %0 = arith.muli %arg0, %c1_i32 : i32
    %1 = arith.addi %0, %arg1 : i32
    %c0_i32 = arith.constant 0 : i32
    %c0_i32_0 = arith.constant 0 : i32
    return %1, %c0_i32 : i32, i32
  }
  func.func @transform_1(%arg0: i32, %arg1: i32) -> (i32, i32) {
    %c1_i32 = arith.constant 1 : i32
    %0 = arith.muli %arg0, %c1_i32 : i32
    %1 = arith.addi %0, %arg1 : i32
    %c0_i32 = arith.constant 0 : i32
    %c0_i32_0 = arith.constant 0 : i32
    return %1, %c0_i32 : i32, i32
  }
  func.func @transform_2(%arg0: i32, %arg1: i32) -> (i32, i32, i32) {
    %c1_i32 = arith.constant 1 : i32
    %0 = arith.muli %arg0, %c1_i32 : i32
    %1 = arith.addi %0, %arg1 : i32
    %c0_i32 = arith.constant 0 : i32
    %c0_i32_0 = arith.constant 0 : i32
    %c0_i32_1 = arith.constant 0 : i32
    return %c0_i32, %1, %c0_i32_0 : i32, i32, i32
  }
  func.func @transform_3(%arg0: i32, %arg1: i32) -> (i32, i32) {
    %c1_i32 = arith.constant 1 : i32
    %0 = arith.muli %arg0, %c1_i32 : i32
    %1 = arith.addi %0, %arg1 : i32
    %c0_i32 = arith.constant 0 : i32
    %c0_i32_0 = arith.constant 0 : i32
    return %1, %c0_i32 : i32, i32
  }
  func.func @transform_4(%arg0: i32, %arg1: i32) -> (i32, i32, i32) {
    %c0_i32 = arith.constant 0 : i32
    %c0_i32_0 = arith.constant 0 : i32
    %c0_i32_1 = arith.constant 0 : i32
    return %arg0, %c0_i32, %c0_i32_0 : i32, i32, i32
  }
}

</mosaic_0001>

<llo_original>
// kernel: _fused_call.1
$region0: #{_fused_call.1}
  #allocation0 [shape = 'u32[]', space=smem, size = 0x4, offset = 0x4, fixed_abs, tag = 'smem constant byte address 0x4 - core index']
  #allocation1 [shape = 'u32[144,128]{1,0:T(1,128)}', space=vmem, size = 0x12000, scoped, tag = 'internal scratch']
  #allocation2 [shape = 'f32[8,128]{1,0:T(8,128)}', space=vmem, size = 0x1000, scoped, tag = 'scratch operand']
  %s0 = inlined_call_operand.vmem [shape: f32[640,3], index: 0, kind: input, shape index: {}]
  %s1 = inlined_call_operand.vmem [shape: f32[640,1], index: 1, kind: input, shape index: {}]
  %s2 = inlined_call_operand.vmem [shape: f32[3,640,128], index: 2, kind: input, shape index: {}]
  %s3 = inlined_call_operand.vmem [shape: f32[640,128], index: 3, kind: input, shape index: {}]
  %s4 = inlined_call_operand.vmem [shape: f32[1,8,128], index: 4, kind: output, shape index: {}]
  %s5 = sld [smem:[#allocation0]]
  $region34: #{_fused_call.1} parent=0
    _
  %s7 = ssub.s32 1, %s5
  %s8 = scalar_select 0, %s7, %s5
  // Predicated region
  $region2: #{_fused_call.1} parent=0 // pred_check
    _
  $region3: #{_fused_call.1} parent=0 // pred_check_branch
    %10 = sbr.rel (0) target = $region5
  $region4: #{_fused_call.1} parent=0 // pred_region
    %s11 = sadd.s32 0, 0
    %s12 = smul.u32 80, %s11
    %p13 = scmp.lt.s32.totalorder %s12, 79
    %s14 = scalar_select %p13, %s12, 79
    %s15 = smul.addr %s14, 8
    %s16 = scalar_lea.vmem %s0, %s15
    %s17 = sadd.s32 0, 0
    %s18 = smul.u32 80, %s17
  $region5: #{_fused_call.1} parent=0 // pred_fallthru
    _
  // Predicated region
  $region6: #{_fused_call.1} parent=0 // pred_check
    _
  $region7: #{_fused_call.1} parent=0 // pred_check_branch
    %20 = sbr.rel (0) target = $region9
  $region8: #{_fused_call.1} parent=0 // pred_region
    %s21 = sadd.s32 0, 0
    %s22 = smul.u32 80, %s21
    %p23 = scmp.lt.s32.totalorder %s22, 79
    %s24 = scalar_select %p23, %s22, 79
    %s25 = smul.addr %s24, 8
    %s26 = scalar_lea.vmem %s1, %s25
    %s27 = sadd.s32 0, 0
    %s28 = smul.u32 80, %s27
  $region9: #{_fused_call.1} parent=0 // pred_fallthru
    _
  // Predicated region
  $region10: #{_fused_call.1} parent=0 // pred_check
    _
  $region11: #{_fused_call.1} parent=0 // pred_check_branch
    %30 = sbr.rel (0) target = $region13
  $region12: #{_fused_call.1} parent=0 // pred_region
    %s31 = sadd.s32 0, 0
    %s32 = smul.u32 80, %s31
    %p33 = scmp.lt.s32.totalorder %s32, 79
    %s34 = scalar_select %p33, %s32, 79
    %s35 = smul.addr %s34, 8
    %s36 = scalar_lea.vmem %s2, %s35
    %s37 = sadd.s32 0, 0
    %s38 = smul.u32 80, %s37
  $region13: #{_fused_call.1} parent=0 // pred_fallthru
    _
  // Predicated region
  $region14: #{_fused_call.1} parent=0 // pred_check
    _
  $region15: #{_fused_call.1} parent=0 // pred_check_branch
    %40 = sbr.rel (0) target = $region17
  $region16: #{_fused_call.1} parent=0 // pred_region
    %s41 = sadd.s32 0, 0
    %s42 = smul.u32 80, %s41
    %p43 = scmp.lt.s32.totalorder %s42, 79
    %s44 = scalar_select %p43, %s42, 79
    %s45 = smul.addr %s44, 8
    %s46 = scalar_lea.vmem %s3, %s45
    %s47 = sadd.s32 0, 0
    %s48 = smul.u32 80, %s47
  $region17: #{_fused_call.1} parent=0 // pred_fallthru
    _
  %s49 = sadd.s32 0, 0
  %s50 = smul.u32 80, %s49
  %p51 = scmp.lt.s32.totalorder %s50, 79
  %s52 = scalar_select %p51, %s50, 79
  %s53 = smul.addr %s52, 8
  %s54 = scalar_lea.vmem %s0, %s53
  %s55 = sadd.s32 0, 0
  %s56 = smul.u32 80, %s55
  %p57 = scmp.lt.s32.totalorder %s56, 79
  %s58 = scalar_select %p57, %s56, 79
  %s59 = smul.addr %s58, 8
  %s60 = scalar_lea.vmem %s1, %s59
  %s61 = sadd.s32 0, 0
  %s62 = smul.u32 80, %s61
  %p63 = scmp.lt.s32.totalorder %s62, 79
  %s64 = scalar_select %p63, %s62, 79
  %s65 = smul.addr %s64, 8
  %s66 = scalar_lea.vmem %s2, %s65
  %s67 = sadd.s32 0, 0
  %s68 = smul.u32 80, %s67
  %p69 = scmp.lt.s32.totalorder %s68, 79
  %s70 = scalar_select %p69, %s68, 79
  %s71 = smul.addr %s70, 8
  %s72 = scalar_lea.vmem %s3, %s71
  %s73 = sadd.s32 0, 0
  %s74 = smul.u32 80, %s73
  %p75 = scmp.lt.s32.totalorder %s74, 79
  %s76 = scalar_select %p75, %s74, 79
  %s77 = smul.addr %s76, 8
  %s78 = scalar_lea.vmem %s0, %s77
  %s79 = sadd.s32 0, 0
  %s80 = smul.u32 80, %s79
  %s81 = sadd.s32 0, 0
  %s82 = smul.u32 80, %s81
  %p83 = scmp.lt.s32.totalorder %s82, 79
  %s84 = scalar_select %p83, %s82, 79
  %s85 = smul.addr %s84, 8
  %s86 = scalar_lea.vmem %s1, %s85
  %s87 = sadd.s32 0, 0
  %s88 = smul.u32 80, %s87
  %s89 = sadd.s32 0, 0
  %s90 = smul.u32 80, %s89
  %p91 = scmp.lt.s32.totalorder %s90, 79
  %s92 = scalar_select %p91, %s90, 79
  %s93 = smul.addr %s92, 8
  %s94 = scalar_lea.vmem %s2, %s93
  %s95 = sadd.s32 0, 0
  %s96 = smul.u32 80, %s95
  %s97 = sadd.s32 0, 0
  %s98 = smul.u32 80, %s97
  %p99 = scmp.lt.s32.totalorder %s98, 79
  %s100 = scalar_select %p99, %s98, 79
  %s101 = smul.addr %s100, 8
  %s102 = scalar_lea.vmem %s3, %s101
  %s103 = sadd.s32 0, 0
  %s104 = smul.u32 80, %s103
  %p105 = scmp.eq.s32.totalorder 0, 0
  // Predicated region
  $region18: #{_fused_call.1} parent=0 // pred_check
    %p106 = pneg %p105
  $region19: #{_fused_call.1} parent=0 // pred_check_branch
    %108 = sbr.rel (%p106) target = $region21
  $region20: #{_fused_call.1} parent=0 // pred_region
    %109 = vst [vmem:[#allocation2] sm:$0xff] 0.0
  $region21: #{_fused_call.1} parent=0 // pred_fallthru
    _
  %v110 = vld [vmem:[%s78] sm:$0xff]
  %v111 = vld [vmem:[%s78 + $0x8] sm:$0xff]
  %v112 = vld [vmem:[%s78 + $0x10] sm:$0xff]
  %v113 = vld [vmem:[%s78 + $0x18] sm:$0xff]
  %v114 = vld [vmem:[%s78 + $0x20] sm:$0xff]
  %v115 = vld [vmem:[%s78 + $0x28] sm:$0xff]
  %v116 = vld [vmem:[%s78 + $0x30] sm:$0xff]
  %v117 = vld [vmem:[%s78 + $0x38] sm:$0xff]
  %v118 = vld [vmem:[%s78 + $0x40] sm:$0xff]
  %v119 = vld [vmem:[%s78 + $0x48] sm:$0xff]
  %v120 = vld [vmem:[%s78 + $0x50] sm:$0xff]
  %v121 = vld [vmem:[%s78 + $0x58] sm:$0xff]
  %v122 = vld [vmem:[%s78 + $0x60] sm:$0xff]
  %v123 = vld [vmem:[%s78 + $0x68] sm:$0xff]
  %v124 = vld [vmem:[%s78 + $0x70] sm:$0xff]
  %v125 = vld [vmem:[%s78 + $0x78] sm:$0xff]
  %v126 = vld [vmem:[%s78 + $0x80] sm:$0xff]
  %v127 = vld [vmem:[%s78 + $0x88] sm:$0xff]
  %v128 = vld [vmem:[%s78 + $0x90] sm:$0xff]
  %v129 = vld [vmem:[%s78 + $0x98] sm:$0xff]
  %v130 = vld [vmem:[%s78 + $0xa0] sm:$0xff]
  %v131 = vld [vmem:[%s78 + $0xa8] sm:$0xff]
  %v132 = vld [vmem:[%s78 + $0xb0] sm:$0xff]
  %v133 = vld [vmem:[%s78 + $0xb8] sm:$0xff]
  %v134 = vld [vmem:[%s78 + $0xc0] sm:$0xff]
  %v135 = vld [vmem:[%s78 + $0xc8] sm:$0xff]
  %v136 = vld [vmem:[%s78 + $0xd0] sm:$0xff]
  %v137 = vld [vmem:[%s78 + $0xd8] sm:$0xff]
  %v138 = vld [vmem:[%s78 + $0xe0] sm:$0xff]
  %v139 = vld [vmem:[%s78 + $0xe8] sm:$0xff]
  %v140 = vld [vmem:[%s78 + $0xf0] sm:$0xff]
  %v141 = vld [vmem:[%s78 + $0xf8] sm:$0xff]
  %v142 = vld [vmem:[%s78 + $0x100] sm:$0xff]
  %v143 = vld [vmem:[%s78 + $0x108] sm:$0xff]
  %v144 = vld [vmem:[%s78 + $0x110] sm:$0xff]
  %v145 = vld [vmem:[%s78 + $0x118] sm:$0xff]
  %v146 = vld [vmem:[%s78 + $0x120] sm:$0xff]
  %v147 = vld [vmem:[%s78 + $0x128] sm:$0xff]
  %v148 = vld [vmem:[%s78 + $0x130] sm:$0xff]
  %v149 = vld [vmem:[%s78 + $0x138] sm:$0xff]
  %v150 = vld [vmem:[%s78 + $0x140] sm:$0xff]
  %v151 = vld [vmem:[%s78 + $0x148] sm:$0xff]
  %v152 = vld [vmem:[%s78 + $0x150] sm:$0xff]
  %v153 = vld [vmem:[%s78 + $0x158] sm:$0xff]
  %v154 = vld [vmem:[%s78 + $0x160] sm:$0xff]
  %v155 = vld [vmem:[%s78 + $0x168] sm:$0xff]
  %v156 = vld [vmem:[%s78 + $0x170] sm:$0xff]
  %v157 = vld [vmem:[%s78 + $0x178] sm:$0xff]
  %v158 = vld [vmem:[%s78 + $0x180] sm:$0xff]
  %v159 = vld [vmem:[%s78 + $0x188] sm:$0xff]
  %v160 = vld [vmem:[%s78 + $0x190] sm:$0xff]
  %v161 = vld [vmem:[%s78 + $0x198] sm:$0xff]
  %v162 = vld [vmem:[%s78 + $0x1a0] sm:$0xff]
  %v163 = vld [vmem:[%s78 + $0x1a8] sm:$0xff]
  %v164 = vld [vmem:[%s78 + $0x1b0] sm:$0xff]
  %v165 = vld [vmem:[%s78 + $0x1b8] sm:$0xff]
  %v166 = vld [vmem:[%s78 + $0x1c0] sm:$0xff]
  %v167 = vld [vmem:[%s78 + $0x1c8] sm:$0xff]
  %v168 = vld [vmem:[%s78 + $0x1d0] sm:$0xff]
  %v169 = vld [vmem:[%s78 + $0x1d8] sm:$0xff]
  %v170 = vld [vmem:[%s78 + $0x1e0] sm:$0xff]
  %v171 = vld [vmem:[%s78 + $0x1e8] sm:$0xff]
  %v172 = vld [vmem:[%s78 + $0x1f0] sm:$0xff]
  %v173 = vld [vmem:[%s78 + $0x1f8] sm:$0xff]
  %v174 = vld [vmem:[%s78 + $0x200] sm:$0xff]
  %v175 = vld [vmem:[%s78 + $0x208] sm:$0xff]
  %v176 = vld [vmem:[%s78 + $0x210] sm:$0xff]
  %v177 = vld [vmem:[%s78 + $0x218] sm:$0xff]
  %v178 = vld [vmem:[%s78 + $0x220] sm:$0xff]
  %v179 = vld [vmem:[%s78 + $0x228] sm:$0xff]
  %v180 = vld [vmem:[%s78 + $0x230] sm:$0xff]
  %v181 = vld [vmem:[%s78 + $0x238] sm:$0xff]
  %v182 = vld [vmem:[%s78 + $0x240] sm:$0xff]
  %v183 = vld [vmem:[%s78 + $0x248] sm:$0xff]
  %v184 = vld [vmem:[%s78 + $0x250] sm:$0xff]
  %v185 = vld [vmem:[%s78 + $0x258] sm:$0xff]
  %v186 = vld [vmem:[%s78 + $0x260] sm:$0xff]
  %v187 = vld [vmem:[%s78 + $0x268] sm:$0xff]
  %v188 = vld [vmem:[%s78 + $0x270] sm:$0xff]
  %v189 = vld [vmem:[%s78 + $0x278] sm:$0xff]
  %v190 = vld [vmem:[%s94] sm:$0xff]
  %v191 = vld [vmem:[%s94 + $0x8] sm:$0xff]
  %v192 = vld [vmem:[%s94 + $0x10] sm:$0xff]
  %v193 = vld [vmem:[%s94 + $0x18] sm:$0xff]
  %v194 = vld [vmem:[%s94 + $0x20] sm:$0xff]
  %v195 = vld [vmem:[%s94 + $0x28] sm:$0xff]
  %v196 = vld [vmem:[%s94 + $0x30] sm:$0xff]
  %v197 = vld [vmem:[%s94 + $0x38] sm:$0xff]
  %v198 = vld [vmem:[%s94 + $0x40] sm:$0xff]
  %v199 = vld [vmem:[%s94 + $0x48] sm:$0xff]
  %v200 = vld [vmem:[%s94 + $0x50] sm:$0xff]
  %v201 = vld [vmem:[%s94 + $0x58] sm:$0xff]
  %v202 = vld [vmem:[%s94 + $0x60] sm:$0xff]
  %v203 = vld [vmem:[%s94 + $0x68] sm:$0xff]
  %v204 = vld [vmem:[%s94 + $0x70] sm:$0xff]
  %v205 = vld [vmem:[%s94 + $0x78] sm:$0xff]
  %v206 = vld [vmem:[%s94 + $0x80] sm:$0xff]
  %v207 = vld [vmem:[%s94 + $0x88] sm:$0xff]
  %v208 = vld [vmem:[%s94 + $0x90] sm:$0xff]
  %v209 = vld [vmem:[%s94 + $0x98] sm:$0xff]
  %v210 = vld [vmem:[%s94 + $0xa0] sm:$0xff]
  %v211 = vld [vmem:[%s94 + $0xa8] sm:$0xff]
  %v212 = vld [vmem:[%s94 + $0xb0] sm:$0xff]
  %v213 = vld [vmem:[%s94 + $0xb8] sm:$0xff]
  %v214 = vld [vmem:[%s94 + $0xc0] sm:$0xff]
  %v215 = vld [vmem:[%s94 + $0xc8] sm:$0xff]
  %v216 = vld [vmem:[%s94 + $0xd0] sm:$0xff]
  %v217 = vld [vmem:[%s94 + $0xd8] sm:$0xff]
  %v218 = vld [vmem:[%s94 + $0xe0] sm:$0xff]
  %v219 = vld [vmem:[%s94 + $0xe8] sm:$0xff]
  %v220 = vld [vmem:[%s94 + $0xf0] sm:$0xff]
  %v221 = vld [vmem:[%s94 + $0xf8] sm:$0xff]
  %v222 = vld [vmem:[%s94 + $0x100] sm:$0xff]
  %v223 = vld [vmem:[%s94 + $0x108] sm:$0xff]
  %v224 = vld [vmem:[%s94 + $0x110] sm:$0xff]
  %v225 = vld [vmem:[%s94 + $0x118] sm:$0xff]
  %v226 = vld [vmem:[%s94 + $0x120] sm:$0xff]
  %v227 = vld [vmem:[%s94 + $0x128] sm:$0xff]
  %v228 = vld [vmem:[%s94 + $0x130] sm:$0xff]
  %v229 = vld [vmem:[%s94 + $0x138] sm:$0xff]
  %v230 = vld [vmem:[%s94 + $0x140] sm:$0xff]
  %v231 = vld [vmem:[%s94 + $0x148] sm:$0xff]
  %v232 = vld [vmem:[%s94 + $0x150] sm:$0xff]
  %v233 = vld [vmem:[%s94 + $0x158] sm:$0xff]
  %v234 = vld [vmem:[%s94 + $0x160] sm:$0xff]
  %v235 = vld [vmem:[%s94 + $0x168] sm:$0xff]
  %v236 = vld [vmem:[%s94 + $0x170] sm:$0xff]
  %v237 = vld [vmem:[%s94 + $0x178] sm:$0xff]
  %v238 = vld [vmem:[%s94 + $0x180] sm:$0xff]
  %v239 = vld [vmem:[%s94 + $0x188] sm:$0xff]
  %v240 = vld [vmem:[%s94 + $0x190] sm:$0xff]
  %v241 = vld [vmem:[%s94 + $0x198] sm:$0xff]
  %v242 = vld [vmem:[%s94 + $0x1a0] sm:$0xff]
  %v243 = vld [vmem:[%s94 + $0x1a8] sm:$0xff]
  %v244 = vld [vmem:[%s94 + $0x1b0] sm:$0xff]
  %v245 = vld [vmem:[%s94 + $0x1b8] sm:$0xff]
  %v246 = vld [vmem:[%s94 + $0x1c0] sm:$0xff]
  %v247 = vld [vmem:[%s94 + $0x1c8] sm:$0xff]
  %v248 = vld [vmem:[%s94 + $0x1d0] sm:$0xff]
  %v249 = vld [vmem:[%s94 + $0x1d8] sm:$0xff]
  %v250 = vld [vmem:[%s94 + $0x1e0] sm:$0xff]
  %v251 = vld [vmem:[%s94 + $0x1e8] sm:$0xff]
  %v252 = vld [vmem:[%s94 + $0x1f0] sm:$0xff]
  %v253 = vld [vmem:[%s94 + $0x1f8] sm:$0xff]
  %v254 = vld [vmem:[%s94 + $0x200] sm:$0xff]
  %v255 = vld [vmem:[%s94 + $0x208] sm:$0xff]
  %v256 = vld [vmem:[%s94 + $0x210] sm:$0xff]
  %v257 = vld [vmem:[%s94 + $0x218] sm:$0xff]
  %v258 = vld [vmem:[%s94 + $0x220] sm:$0xff]
  %v259 = vld [vmem:[%s94 + $0x228] sm:$0xff]
  %v260 = vld [vmem:[%s94 + $0x230] sm:$0xff]
  %v261 = vld [vmem:[%s94 + $0x238] sm:$0xff]
  %v262 = vld [vmem:[%s94 + $0x240] sm:$0xff]
  %v263 = vld [vmem:[%s94 + $0x248] sm:$0xff]
  %v264 = vld [vmem:[%s94 + $0x250] sm:$0xff]
  %v265 = vld [vmem:[%s94 + $0x258] sm:$0xff]
  %v266 = vld [vmem:[%s94 + $0x260] sm:$0xff]
  %v267 = vld [vmem:[%s94 + $0x268] sm:$0xff]
  %v268 = vld [vmem:[%s94 + $0x270] sm:$0xff]
  %v269 = vld [vmem:[%s94 + $0x278] sm:$0xff]
  %271 = vset.pattern.permute.xlu0 0
  %272 = vperm.xlu0 %271, %v110
  %v273 = vpop.permute.xlu0 %272
  %276 = vset.pattern.permute.xlu0 0
  %277 = vperm.xlu0 %276, %v111
  %v278 = vpop.permute.xlu0 %277
  %281 = vset.pattern.permute.xlu0 0
  %282 = vperm.xlu0 %281, %v112
  %v283 = vpop.permute.xlu0 %282
  %286 = vset.pattern.permute.xlu0 0
  %287 = vperm.xlu0 %286, %v113
  %v288 = vpop.permute.xlu0 %287
  %291 = vset.pattern.permute.xlu0 0
  %292 = vperm.xlu0 %291, %v114
  %v293 = vpop.permute.xlu0 %292
  %296 = vset.pattern.permute.xlu0 0
  %297 = vperm.xlu0 %296, %v115
  %v298 = vpop.permute.xlu0 %297
  %301 = vset.pattern.permute.xlu0 0
  %302 = vperm.xlu0 %301, %v116
  %v303 = vpop.permute.xlu0 %302
  %306 = vset.pattern.permute.xlu0 0
  %307 = vperm.xlu0 %306, %v117
  %v308 = vpop.permute.xlu0 %307
  %311 = vset.pattern.permute.xlu0 0
  %312 = vperm.xlu0 %311, %v118
  %v313 = vpop.permute.xlu0 %312
  %316 = vset.pattern.permute.xlu0 0
  %317 = vperm.xlu0 %316, %v119
  %v318 = vpop.permute.xlu0 %317
  %321 = vset.pattern.permute.xlu0 0
  %322 = vperm.xlu0 %321, %v120
  %v323 = vpop.permute.xlu0 %322
  %326 = vset.pattern.permute.xlu0 0
  %327 = vperm.xlu0 %326, %v121
  %v328 = vpop.permute.xlu0 %327
  %331 = vset.pattern.permute.xlu0 0
  %332 = vperm.xlu0 %331, %v122
  %v333 = vpop.permute.xlu0 %332
  %336 = vset.pattern.permute.xlu0 0
  %337 = vperm.xlu0 %336, %v123
  %v338 = vpop.permute.xlu0 %337
  %341 = vset.pattern.permute.xlu0 0
  %342 = vperm.xlu0 %341, %v124
  %v343 = vpop.permute.xlu0 %342
  %346 = vset.pattern.permute.xlu0 0
  %347 = vperm.xlu0 %346, %v125
  %v348 = vpop.permute.xlu0 %347
  %351 = vset.pattern.permute.xlu0 0
  %352 = vperm.xlu0 %351, %v126
  %v353 = vpop.permute.xlu0 %352
  %356 = vset.pattern.permute.xlu0 0
  %357 = vperm.xlu0 %356, %v127
  %v358 = vpop.permute.xlu0 %357
  %361 = vset.pattern.permute.xlu0 0
  %362 = vperm.xlu0 %361, %v128
  %v363 = vpop.permute.xlu0 %362
  %366 = vset.pattern.permute.xlu0 0
  %367 = vperm.xlu0 %366, %v129
  %v368 = vpop.permute.xlu0 %367
  %371 = vset.pattern.permute.xlu0 0
  %372 = vperm.xlu0 %371, %v130
  %v373 = vpop.permute.xlu0 %372
  %376 = vset.pattern.permute.xlu0 0
  %377 = vperm.xlu0 %376, %v131
  %v378 = vpop.permute.xlu0 %377
  %381 = vset.pattern.permute.xlu0 0
  %382 = vperm.xlu0 %381, %v132
  %v383 = vpop.permute.xlu0 %382
  %386 = vset.pattern.permute.xlu0 0
  %387 = vperm.xlu0 %386, %v133
  %v388 = vpop.permute.xlu0 %387
  %391 = vset.pattern.permute.xlu0 0
  %392 = vperm.xlu0 %391, %v134
  %v393 = vpop.permute.xlu0 %392
  %396 = vset.pattern.permute.xlu0 0
  %397 = vperm.xlu0 %396, %v135
  %v398 = vpop.permute.xlu0 %397
  %401 = vset.pattern.permute.xlu0 0
  %402 = vperm.xlu0 %401, %v136
  %v403 = vpop.permute.xlu0 %402
  %406 = vset.pattern.permute.xlu0 0
  %407 = vperm.xlu0 %406, %v137
  %v408 = vpop.permute.xlu0 %407
  %411 = vset.pattern.permute.xlu0 0
  %412 = vperm.xlu0 %411, %v138
  %v413 = vpop.permute.xlu0 %412
  %416 = vset.pattern.permute.xlu0 0
  %417 = vperm.xlu0 %416, %v139
  %v418 = vpop.permute.xlu0 %417
  %421 = vset.pattern.permute.xlu0 0
  %422 = vperm.xlu0 %421, %v140
  %v423 = vpop.permute.xlu0 %422
  %426 = vset.pattern.permute.xlu0 0
  %427 = vperm.xlu0 %426, %v141
  %v428 = vpop.permute.xlu0 %427
  %431 = vset.pattern.permute.xlu0 0
  %432 = vperm.xlu0 %431, %v142
  %v433 = vpop.permute.xlu0 %432
  %436 = vset.pattern.permute.xlu0 0
  %437 = vperm.xlu0 %436, %v143
  %v438 = vpop.permute.xlu0 %437
  %441 = vset.pattern.permute.xlu0 0
  %442 = vperm.xlu0 %441, %v144
  %v443 = vpop.permute.xlu0 %442
  %446 = vset.pattern.permute.xlu0 0
  %447 = vperm.xlu0 %446, %v145
  %v448 = vpop.permute.xlu0 %447
  %451 = vset.pattern.permute.xlu0 0
  %452 = vperm.xlu0 %451, %v146
  %v453 = vpop.permute.xlu0 %452
  %456 = vset.pattern.permute.xlu0 0
  %457 = vperm.xlu0 %456, %v147
  %v458 = vpop.permute.xlu0 %457
  %461 = vset.pattern.permute.xlu0 0
  %462 = vperm.xlu0 %461, %v148
  %v463 = vpop.permute.xlu0 %462
  %466 = vset.pattern.permute.xlu0 0
  %467 = vperm.xlu0 %466, %v149
  %v468 = vpop.permute.xlu0 %467
  %471 = vset.pattern.permute.xlu0 0
  %472 = vperm.xlu0 %471, %v150
  %v473 = vpop.permute.xlu0 %472
  %476 = vset.pattern.permute.xlu0 0
  %477 = vperm.xlu0 %476, %v151
  %v478 = vpop.permute.xlu0 %477
  %481 = vset.pattern.permute.xlu0 0
  %482 = vperm.xlu0 %481, %v152
  %v483 = vpop.permute.xlu0 %482
  %486 = vset.pattern.permute.xlu0 0
  %487 = vperm.xlu0 %486, %v153
  %v488 = vpop.permute.xlu0 %487
  %491 = vset.pattern.permute.xlu0 0
  %492 = vperm.xlu0 %491, %v154
  %v493 = vpop.permute.xlu0 %492
  %496 = vset.pattern.permute.xlu0 0
  %497 = vperm.xlu0 %496, %v155
  %v498 = vpop.permute.xlu0 %497
  %501 = vset.pattern.permute.xlu0 0
  %502 = vperm.xlu0 %501, %v156
  %v503 = vpop.permute.xlu0 %502
  %506 = vset.pattern.permute.xlu0 0
  %507 = vperm.xlu0 %506, %v157
  %v508 = vpop.permute.xlu0 %507
  %511 = vset.pattern.permute.xlu0 0
  %512 = vperm.xlu0 %511, %v158
  %v513 = vpop.permute.xlu0 %512
  %516 = vset.pattern.permute.xlu0 0
  %517 = vperm.xlu0 %516, %v159
  %v518 = vpop.permute.xlu0 %517
  %521 = vset.pattern.permute.xlu0 0
  %522 = vperm.xlu0 %521, %v160
  %v523 = vpop.permute.xlu0 %522
  %526 = vset.pattern.permute.xlu0 0
  %527 = vperm.xlu0 %526, %v161
  %v528 = vpop.permute.xlu0 %527
  %531 = vset.pattern.permute.xlu0 0
  %532 = vperm.xlu0 %531, %v162
  %v533 = vpop.permute.xlu0 %532
  %536 = vset.pattern.permute.xlu0 0
  %537 = vperm.xlu0 %536, %v163
  %v538 = vpop.permute.xlu0 %537
  %541 = vset.pattern.permute.xlu0 0
  %542 = vperm.xlu0 %541, %v164
  %v543 = vpop.permute.xlu0 %542
  %546 = vset.pattern.permute.xlu0 0
  %547 = vperm.xlu0 %546, %v165
  %v548 = vpop.permute.xlu0 %547
  %551 = vset.pattern.permute.xlu0 0
  %552 = vperm.xlu0 %551, %v166
  %v553 = vpop.permute.xlu0 %552
  %556 = vset.pattern.permute.xlu0 0
  %557 = vperm.xlu0 %556, %v167
  %v558 = vpop.permute.xlu0 %557
  %561 = vset.pattern.permute.xlu0 0
  %562 = vperm.xlu0 %561, %v168
  %v563 = vpop.permute.xlu0 %562
  %566 = vset.pattern.permute.xlu0 0
  %567 = vperm.xlu0 %566, %v169
  %v568 = vpop.permute.xlu0 %567
  %571 = vset.pattern.permute.xlu0 0
  %572 = vperm.xlu0 %571, %v170
  %v573 = vpop.permute.xlu0 %572
  %576 = vset.pattern.permute.xlu0 0
  %577 = vperm.xlu0 %576, %v171
  %v578 = vpop.permute.xlu0 %577
  %581 = vset.pattern.permute.xlu0 0
  %582 = vperm.xlu0 %581, %v172
  %v583 = vpop.permute.xlu0 %582
  %586 = vset.pattern.permute.xlu0 0
  %587 = vperm.xlu0 %586, %v173
  %v588 = vpop.permute.xlu0 %587
  %591 = vset.pattern.permute.xlu0 0
  %592 = vperm.xlu0 %591, %v174
  %v593 = vpop.permute.xlu0 %592
  %596 = vset.pattern.permute.xlu0 0
  %597 = vperm.xlu0 %596, %v175
  %v598 = vpop.permute.xlu0 %597
  %601 = vset.pattern.permute.xlu0 0
  %602 = vperm.xlu0 %601, %v176
  %v603 = vpop.permute.xlu0 %602
  %606 = vset.pattern.permute.xlu0 0
  %607 = vperm.xlu0 %606, %v177
  %v608 = vpop.permute.xlu0 %607
  %611 = vset.pattern.permute.xlu0 0
  %612 = vperm.xlu0 %611, %v178
  %v613 = vpop.permute.xlu0 %612
  %616 = vset.pattern.permute.xlu0 0
  %617 = vperm.xlu0 %616, %v179
  %v618 = vpop.permute.xlu0 %617
  %621 = vset.pattern.permute.xlu0 0
  %622 = vperm.xlu0 %621, %v180
  %v623 = vpop.permute.xlu0 %622
  %626 = vset.pattern.permute.xlu0 0
  %627 = vperm.xlu0 %626, %v181
  %v628 = vpop.permute.xlu0 %627
  %631 = vset.pattern.permute.xlu0 0
  %632 = vperm.xlu0 %631, %v182
  %v633 = vpop.permute.xlu0 %632
  %636 = vset.pattern.permute.xlu0 0
  %637 = vperm.xlu0 %636, %v183
  %v638 = vpop.permute.xlu0 %637
  %641 = vset.pattern.permute.xlu0 0
  %642 = vperm.xlu0 %641, %v184
  %v643 = vpop.permute.xlu0 %642
  %646 = vset.pattern.permute.xlu0 0
  %647 = vperm.xlu0 %646, %v185
  %v648 = vpop.permute.xlu0 %647
  %651 = vset.pattern.permute.xlu0 0
  %652 = vperm.xlu0 %651, %v186
  %v653 = vpop.permute.xlu0 %652
  %656 = vset.pattern.permute.xlu0 0
  %657 = vperm.xlu0 %656, %v187
  %v658 = vpop.permute.xlu0 %657
  %661 = vset.pattern.permute.xlu0 0
  %662 = vperm.xlu0 %661, %v188
  %v663 = vpop.permute.xlu0 %662
  %666 = vset.pattern.permute.xlu0 0
  %667 = vperm.xlu0 %666, %v189
  %v668 = vpop.permute.xlu0 %667
  %v670 = vmul.f32 %v273, %v190
  %v671 = vmul.f32 %v278, %v191
  %v672 = vmul.f32 %v283, %v192
  %v673 = vmul.f32 %v288, %v193
  %v674 = vmul.f32 %v293, %v194
  %v675 = vmul.f32 %v298, %v195
  %v676 = vmul.f32 %v303, %v196
  %v677 = vmul.f32 %v308, %v197
  %v678 = vmul.f32 %v313, %v198
  %v679 = vmul.f32 %v318, %v199
  %v680 = vmul.f32 %v323, %v200
  %v681 = vmul.f32 %v328, %v201
  %v682 = vmul.f32 %v333, %v202
  %v683 = vmul.f32 %v338, %v203
  %v684 = vmul.f32 %v343, %v204
  %v685 = vmul.f32 %v348, %v205
  %v686 = vmul.f32 %v353, %v206
  %v687 = vmul.f32 %v358, %v207
  %v688 = vmul.f32 %v363, %v208
  %v689 = vmul.f32 %v368, %v209
  %v690 = vmul.f32 %v373, %v210
  %v691 = vmul.f32 %v378, %v211
  %v692 = vmul.f32 %v383, %v212
  %v693 = vmul.f32 %v388, %v213
  %v694 = vmul.f32 %v393, %v214
  %v695 = vmul.f32 %v398, %v215
  %v696 = vmul.f32 %v403, %v216
  %v697 = vmul.f32 %v408, %v217
  %v698 = vmul.f32 %v413, %v218
  %v699 = vmul.f32 %v418, %v219
  %v700 = vmul.f32 %v423, %v220
  %v701 = vmul.f32 %v428, %v221
  %v702 = vmul.f32 %v433, %v222
  %v703 = vmul.f32 %v438, %v223
  %v704 = vmul.f32 %v443, %v224
  %v705 = vmul.f32 %v448, %v225
  %v706 = vmul.f32 %v453, %v226
  %v707 = vmul.f32 %v458, %v227
  %v708 = vmul.f32 %v463, %v228
  %v709 = vmul.f32 %v468, %v229
  %v710 = vmul.f32 %v473, %v230
  %v711 = vmul.f32 %v478, %v231
  %v712 = vmul.f32 %v483, %v232
  %v713 = vmul.f32 %v488, %v233
  %v714 = vmul.f32 %v493, %v234
  %v715 = vmul.f32 %v498, %v235
  %v716 = vmul.f32 %v503, %v236
  %v717 = vmul.f32 %v508, %v237
  %v718 = vmul.f32 %v513, %v238
  %v719 = vmul.f32 %v518, %v239
  %v720 = vmul.f32 %v523, %v240
  %v721 = vmul.f32 %v528, %v241
  %v722 = vmul.f32 %v533, %v242
  %v723 = vmul.f32 %v538, %v243
  %v724 = vmul.f32 %v543, %v244
  %v725 = vmul.f32 %v548, %v245
  %v726 = vmul.f32 %v553, %v246
  %v727 = vmul.f32 %v558, %v247
  %v728 = vmul.f32 %v563, %v248
  %v729 = vmul.f32 %v568, %v249
  %v730 = vmul.f32 %v573, %v250
  %v731 = vmul.f32 %v578, %v251
  %v732 = vmul.f32 %v583, %v252
  %v733 = vmul.f32 %v588, %v253
  %v734 = vmul.f32 %v593, %v254
  %v735 = vmul.f32 %v598, %v255
  %v736 = vmul.f32 %v603, %v256
  %v737 = vmul.f32 %v608, %v257
  %v738 = vmul.f32 %v613, %v258
  %v739 = vmul.f32 %v618, %v259
  %v740 = vmul.f32 %v623, %v260
  %v741 = vmul.f32 %v628, %v261
  %v742 = vmul.f32 %v633, %v262
  %v743 = vmul.f32 %v638, %v263
  %v744 = vmul.f32 %v643, %v264
  %v745 = vmul.f32 %v648, %v265
  %v746 = vmul.f32 %v653, %v266
  %v747 = vmul.f32 %v658, %v267
  %v748 = vmul.f32 %v663, %v268
  %v749 = vmul.f32 %v668, %v269
  %s750 = scalar_lea.vmem %s94, 640
  %v751 = vld [vmem:[%s750] sm:$0xff]
  %v752 = vld [vmem:[%s750 + $0x8] sm:$0xff]
  %v753 = vld [vmem:[%s750 + $0x10] sm:$0xff]
  %v754 = vld [vmem:[%s750 + $0x18] sm:$0xff]
  %v755 = vld [vmem:[%s750 + $0x20] sm:$0xff]
  %v756 = vld [vmem:[%s750 + $0x28] sm:$0xff]
  %v757 = vld [vmem:[%s750 + $0x30] sm:$0xff]
  %v758 = vld [vmem:[%s750 + $0x38] sm:$0xff]
  %v759 = vld [vmem:[%s750 + $0x40] sm:$0xff]
  %v760 = vld [vmem:[%s750 + $0x48] sm:$0xff]
  %v761 = vld [vmem:[%s750 + $0x50] sm:$0xff]
  %v762 = vld [vmem:[%s750 + $0x58] sm:$0xff]
  %v763 = vld [vmem:[%s750 + $0x60] sm:$0xff]
  %v764 = vld [vmem:[%s750 + $0x68] sm:$0xff]
  %v765 = vld [vmem:[%s750 + $0x70] sm:$0xff]
  %v766 = vld [vmem:[%s750 + $0x78] sm:$0xff]
  %v767 = vld [vmem:[%s750 + $0x80] sm:$0xff]
  %v768 = vld [vmem:[%s750 + $0x88] sm:$0xff]
  %v769 = vld [vmem:[%s750 + $0x90] sm:$0xff]
  %v770 = vld [vmem:[%s750 + $0x98] sm:$0xff]
  %v771 = vld [vmem:[%s750 + $0xa0] sm:$0xff]
  %v772 = vld [vmem:[%s750 + $0xa8] sm:$0xff]
  %v773 = vld [vmem:[%s750 + $0xb0] sm:$0xff]
  %v774 = vld [vmem:[%s750 + $0xb8] sm:$0xff]
  %v775 = vld [vmem:[%s750 + $0xc0] sm:$0xff]
  %v776 = vld [vmem:[%s750 + $0xc8] sm:$0xff]
  %v777 = vld [vmem:[%s750 + $0xd0] sm:$0xff]
  %v778 = vld [vmem:[%s750 + $0xd8] sm:$0xff]
  %v779 = vld [vmem:[%s750 + $0xe0] sm:$0xff]
  %v780 = vld [vmem:[%s750 + $0xe8] sm:$0xff]
  %v781 = vld [vmem:[%s750 + $0xf0] sm:$0xff]
  %v782 = vld [vmem:[%s750 + $0xf8] sm:$0xff]
  %v783 = vld [vmem:[%s750 + $0x100] sm:$0xff]
  %v784 = vld [vmem:[%s750 + $0x108] sm:$0xff]
  %v785 = vld [vmem:[%s750 + $0x110] sm:$0xff]
  %v786 = vld [vmem:[%s750 + $0x118] sm:$0xff]
  %v787 = vld [vmem:[%s750 + $0x120] sm:$0xff]
  %v788 = vld [vmem:[%s750 + $0x128] sm:$0xff]
  %v789 = vld [vmem:[%s750 + $0x130] sm:$0xff]
  %v790 = vld [vmem:[%s750 + $0x138] sm:$0xff]
  %v791 = vld [vmem:[%s750 + $0x140] sm:$0xff]
  %v792 = vld [vmem:[%s750 + $0x148] sm:$0xff]
  %v793 = vld [vmem:[%s750 + $0x150] sm:$0xff]
  %v794 = vld [vmem:[%s750 + $0x158] sm:$0xff]
  %v795 = vld [vmem:[%s750 + $0x160] sm:$0xff]
  %v796 = vld [vmem:[%s750 + $0x168] sm:$0xff]
  %v797 = vld [vmem:[%s750 + $0x170] sm:$0xff]
  %v798 = vld [vmem:[%s750 + $0x178] sm:$0xff]
  %v799 = vld [vmem:[%s750 + $0x180] sm:$0xff]
  %v800 = vld [vmem:[%s750 + $0x188] sm:$0xff]
  %v801 = vld [vmem:[%s750 + $0x190] sm:$0xff]
  %v802 = vld [vmem:[%s750 + $0x198] sm:$0xff]
  %v803 = vld [vmem:[%s750 + $0x1a0] sm:$0xff]
  %v804 = vld [vmem:[%s750 + $0x1a8] sm:$0xff]
  %v805 = vld [vmem:[%s750 + $0x1b0] sm:$0xff]
  %v806 = vld [vmem:[%s750 + $0x1b8] sm:$0xff]
  %v807 = vld [vmem:[%s750 + $0x1c0] sm:$0xff]
  %v808 = vld [vmem:[%s750 + $0x1c8] sm:$0xff]
  %v809 = vld [vmem:[%s750 + $0x1d0] sm:$0xff]
  %v810 = vld [vmem:[%s750 + $0x1d8] sm:$0xff]
  %v811 = vld [vmem:[%s750 + $0x1e0] sm:$0xff]
  %v812 = vld [vmem:[%s750 + $0x1e8] sm:$0xff]
  %v813 = vld [vmem:[%s750 + $0x1f0] sm:$0xff]
  %v814 = vld [vmem:[%s750 + $0x1f8] sm:$0xff]
  %v815 = vld [vmem:[%s750 + $0x200] sm:$0xff]
  %v816 = vld [vmem:[%s750 + $0x208] sm:$0xff]
  %v817 = vld [vmem:[%s750 + $0x210] sm:$0xff]
  %v818 = vld [vmem:[%s750 + $0x218] sm:$0xff]
  %v819 = vld [vmem:[%s750 + $0x220] sm:$0xff]
  %v820 = vld [vmem:[%s750 + $0x228] sm:$0xff]
  %v821 = vld [vmem:[%s750 + $0x230] sm:$0xff]
  %v822 = vld [vmem:[%s750 + $0x238] sm:$0xff]
  %v823 = vld [vmem:[%s750 + $0x240] sm:$0xff]
  %v824 = vld [vmem:[%s750 + $0x248] sm:$0xff]
  %v825 = vld [vmem:[%s750 + $0x250] sm:$0xff]
  %v826 = vld [vmem:[%s750 + $0x258] sm:$0xff]
  %v827 = vld [vmem:[%s750 + $0x260] sm:$0xff]
  %v828 = vld [vmem:[%s750 + $0x268] sm:$0xff]
  %v829 = vld [vmem:[%s750 + $0x270] sm:$0xff]
  %v830 = vld [vmem:[%s750 + $0x278] sm:$0xff]
  %831 = vset.pattern.permute.xlu0 1
  %832 = vperm.xlu0 %831, %v110
  %v833 = vpop.permute.xlu0 %832
  %835 = vset.pattern.permute.xlu0 1
  %836 = vperm.xlu0 %835, %v111
  %v837 = vpop.permute.xlu0 %836
  %839 = vset.pattern.permute.xlu0 1
  %840 = vperm.xlu0 %839, %v112
  %v841 = vpop.permute.xlu0 %840
  %843 = vset.pattern.permute.xlu0 1
  %844 = vperm.xlu0 %843, %v113
  %v845 = vpop.permute.xlu0 %844
  %847 = vset.pattern.permute.xlu0 1
  %848 = vperm.xlu0 %847, %v114
  %v849 = vpop.permute.xlu0 %848
  %851 = vset.pattern.permute.xlu0 1
  %852 = vperm.xlu0 %851, %v115
  %v853 = vpop.permute.xlu0 %852
  %855 = vset.pattern.permute.xlu0 1
  %856 = vperm.xlu0 %855, %v116
  %v857 = vpop.permute.xlu0 %856
  %859 = vset.pattern.permute.xlu0 1
  %860 = vperm.xlu0 %859, %v117
  %v861 = vpop.permute.xlu0 %860
  %863 = vset.pattern.permute.xlu0 1
  %864 = vperm.xlu0 %863, %v118
  %v865 = vpop.permute.xlu0 %864
  %867 = vset.pattern.permute.xlu0 1
  %868 = vperm.xlu0 %867, %v119
  %v869 = vpop.permute.xlu0 %868
  %871 = vset.pattern.permute.xlu0 1
  %872 = vperm.xlu0 %871, %v120
  %v873 = vpop.permute.xlu0 %872
  %875 = vset.pattern.permute.xlu0 1
  %876 = vperm.xlu0 %875, %v121
  %v877 = vpop.permute.xlu0 %876
  %879 = vset.pattern.permute.xlu0 1
  %880 = vperm.xlu0 %879, %v122
  %v881 = vpop.permute.xlu0 %880
  %883 = vset.pattern.permute.xlu0 1
  %884 = vperm.xlu0 %883, %v123
  %v885 = vpop.permute.xlu0 %884
  %887 = vset.pattern.permute.xlu0 1
  %888 = vperm.xlu0 %887, %v124
  %v889 = vpop.permute.xlu0 %888
  %891 = vset.pattern.permute.xlu0 1
  %892 = vperm.xlu0 %891, %v125
  %v893 = vpop.permute.xlu0 %892
  %895 = vset.pattern.permute.xlu0 1
  %896 = vperm.xlu0 %895, %v126
  %v897 = vpop.permute.xlu0 %896
  %899 = vset.pattern.permute.xlu0 1
  %900 = vperm.xlu0 %899, %v127
  %v901 = vpop.permute.xlu0 %900
  %903 = vset.pattern.permute.xlu0 1
  %904 = vperm.xlu0 %903, %v128
  %v905 = vpop.permute.xlu0 %904
  %907 = vset.pattern.permute.xlu0 1
  %908 = vperm.xlu0 %907, %v129
  %v909 = vpop.permute.xlu0 %908
  %911 = vset.pattern.permute.xlu0 1
  %912 = vperm.xlu0 %911, %v130
  %v913 = vpop.permute.xlu0 %912
  %915 = vset.pattern.permute.xlu0 1
  %916 = vperm.xlu0 %915, %v131
  %v917 = vpop.permute.xlu0 %916
  %919 = vset.pattern.permute.xlu0 1
  %920 = vperm.xlu0 %919, %v132
  %v921 = vpop.permute.xlu0 %920
  %923 = vset.pattern.permute.xlu0 1
  %924 = vperm.xlu0 %923, %v133
  %v925 = vpop.permute.xlu0 %924
  %927 = vset.pattern.permute.xlu0 1
  %928 = vperm.xlu0 %927, %v134
  %v929 = vpop.permute.xlu0 %928
  %931 = vset.pattern.permute.xlu0 1
  %932 = vperm.xlu0 %931, %v135
  %v933 = vpop.permute.xlu0 %932
  %935 = vset.pattern.permute.xlu0 1
  %936 = vperm.xlu0 %935, %v136
  %v937 = vpop.permute.xlu0 %936
  %939 = vset.pattern.permute.xlu0 1
  %940 = vperm.xlu0 %939, %v137
  %v941 = vpop.permute.xlu0 %940
  %943 = vset.pattern.permute.xlu0 1
  %944 = vperm.xlu0 %943, %v138
  %v945 = vpop.permute.xlu0 %944
  %947 = vset.pattern.permute.xlu0 1
  %948 = vperm.xlu0 %947, %v139
  %v949 = vpop.permute.xlu0 %948
  %951 = vset.pattern.permute.xlu0 1
  %952 = vperm.xlu0 %951, %v140
  %v953 = vpop.permute.xlu0 %952
  %955 = vset.pattern.permute.xlu0 1
  %956 = vperm.xlu0 %955, %v141
  %v957 = vpop.permute.xlu0 %956
  %959 = vset.pattern.permute.xlu0 1
  %960 = vperm.xlu0 %959, %v142
  %v961 = vpop.permute.xlu0 %960
  %963 = vset.pattern.permute.xlu0 1
  %964 = vperm.xlu0 %963, %v143
  %v965 = vpop.permute.xlu0 %964
  %967 = vset.pattern.permute.xlu0 1
  %968 = vperm.xlu0 %967, %v144
  %v969 = vpop.permute.xlu0 %968
  %971 = vset.pattern.permute.xlu0 1
  %972 = vperm.xlu0 %971, %v145
  %v973 = vpop.permute.xlu0 %972
  %975 = vset.pattern.permute.xlu0 1
  %976 = vperm.xlu0 %975, %v146
  %v977 = vpop.permute.xlu0 %976
  %979 = vset.pattern.permute.xlu0 1
  %980 = vperm.xlu0 %979, %v147
  %v981 = vpop.permute.xlu0 %980
  %983 = vset.pattern.permute.xlu0 1
  %984 = vperm.xlu0 %983, %v148
  %v985 = vpop.permute.xlu0 %984
  %987 = vset.pattern.permute.xlu0 1
  %988 = vperm.xlu0 %987, %v149
  %v989 = vpop.permute.xlu0 %988
  %991 = vset.pattern.permute.xlu0 1
  %992 = vperm.xlu0 %991, %v150
  %v993 = vpop.permute.xlu0 %992
  %995 = vset.pattern.permute.xlu0 1
  %996 = vperm.xlu0 %995, %v151
  %v997 = vpop.permute.xlu0 %996
  %999 = vset.pattern.permute.xlu0 1
  %1000 = vperm.xlu0 %999, %v152
  %v1001 = vpop.permute.xlu0 %1000
  %1003 = vset.pattern.permute.xlu0 1
  %1004 = vperm.xlu0 %1003, %v153
  %v1005 = vpop.permute.xlu0 %1004
  %1007 = vset.pattern.permute.xlu0 1
  %1008 = vperm.xlu0 %1007, %v154
  %v1009 = vpop.permute.xlu0 %1008
  %1011 = vset.pattern.permute.xlu0 1
  %1012 = vperm.xlu0 %1011, %v155
  %v1013 = vpop.permute.xlu0 %1012
  %1015 = vset.pattern.permute.xlu0 1
  %1016 = vperm.xlu0 %1015, %v156
  %v1017 = vpop.permute.xlu0 %1016
  %1019 = vset.pattern.permute.xlu0 1
  %1020 = vperm.xlu0 %1019, %v157
  %v1021 = vpop.permute.xlu0 %1020
  %1023 = vset.pattern.permute.xlu0 1
  %1024 = vperm.xlu0 %1023, %v158
  %v1025 = vpop.permute.xlu0 %1024
  %1027 = vset.pattern.permute.xlu0 1
  %1028 = vperm.xlu0 %1027, %v159
  %v1029 = vpop.permute.xlu0 %1028
  %1031 = vset.pattern.permute.xlu0 1
  %1032 = vperm.xlu0 %1031, %v160
  %v1033 = vpop.permute.xlu0 %1032
  %1035 = vset.pattern.permute.xlu0 1
  %1036 = vperm.xlu0 %1035, %v161
  %v1037 = vpop.permute.xlu0 %1036
  %1039 = vset.pattern.permute.xlu0 1
  %1040 = vperm.xlu0 %1039, %v162
  %v1041 = vpop.permute.xlu0 %1040
  %1043 = vset.pattern.permute.xlu0 1
  %1044 = vperm.xlu0 %1043, %v163
  %v1045 = vpop.permute.xlu0 %1044
  %1047 = vset.pattern.permute.xlu0 1
  %1048 = vperm.xlu0 %1047, %v164
  %v1049 = vpop.permute.xlu0 %1048
  %1051 = vset.pattern.permute.xlu0 1
  %1052 = vperm.xlu0 %1051, %v165
  %v1053 = vpop.permute.xlu0 %1052
  %1055 = vset.pattern.permute.xlu0 1
  %1056 = vperm.xlu0 %1055, %v166
  %v1057 = vpop.permute.xlu0 %1056
  %1059 = vset.pattern.permute.xlu0 1
  %1060 = vperm.xlu0 %1059, %v167
  %v1061 = vpop.permute.xlu0 %1060
  %1063 = vset.pattern.permute.xlu0 1
  %1064 = vperm.xlu0 %1063, %v168
  %v1065 = vpop.permute.xlu0 %1064
  %1067 = vset.pattern.permute.xlu0 1
  %1068 = vperm.xlu0 %1067, %v169
  %v1069 = vpop.permute.xlu0 %1068
  %1071 = vset.pattern.permute.xlu0 1
  %1072 = vperm.xlu0 %1071, %v170
  %v1073 = vpop.permute.xlu0 %1072
  %1075 = vset.pattern.permute.xlu0 1
  %1076 = vperm.xlu0 %1075, %v171
  %v1077 = vpop.permute.xlu0 %1076
  %1079 = vset.pattern.permute.xlu0 1
  %1080 = vperm.xlu0 %1079, %v172
  %v1081 = vpop.permute.xlu0 %1080
  %1083 = vset.pattern.permute.xlu0 1
  %1084 = vperm.xlu0 %1083, %v173
  %v1085 = vpop.permute.xlu0 %1084
  %1087 = vset.pattern.permute.xlu0 1
  %1088 = vperm.xlu0 %1087, %v174
  %v1089 = vpop.permute.xlu0 %1088
  %1091 = vset.pattern.permute.xlu0 1
  %1092 = vperm.xlu0 %1091, %v175
  %v1093 = vpop.permute.xlu0 %1092
  %1095 = vset.pattern.permute.xlu0 1
  %1096 = vperm.xlu0 %1095, %v176
  %v1097 = vpop.permute.xlu0 %1096
  %1099 = vset.pattern.permute.xlu0 1
  %1100 = vperm.xlu0 %1099, %v177
  %v1101 = vpop.permute.xlu0 %1100
  %1103 = vset.pattern.permute.xlu0 1
  %1104 = vperm.xlu0 %1103, %v178
  %v1105 = vpop.permute.xlu0 %1104
  %1107 = vset.pattern.permute.xlu0 1
  %1108 = vperm.xlu0 %1107, %v179
  %v1109 = vpop.permute.xlu0 %1108
  %1111 = vset.pattern.permute.xlu0 1
  %1112 = vperm.xlu0 %1111, %v180
  %v1113 = vpop.permute.xlu0 %1112
  %1115 = vset.pattern.permute.xlu0 1
  %1116 = vperm.xlu0 %1115, %v181
  %v1117 = vpop.permute.xlu0 %1116
  %1119 = vset.pattern.permute.xlu0 1
  %1120 = vperm.xlu0 %1119, %v182
  %v1121 = vpop.permute.xlu0 %1120
  %1123 = vset.pattern.permute.xlu0 1
  %1124 = vperm.xlu0 %1123, %v183
  %v1125 = vpop.permute.xlu0 %1124
  %1127 = vset.pattern.permute.xlu0 1
  %1128 = vperm.xlu0 %1127, %v184
  %v1129 = vpop.permute.xlu0 %1128
  %1131 = vset.pattern.permute.xlu0 1
  %1132 = vperm.xlu0 %1131, %v185
  %v1133 = vpop.permute.xlu0 %1132
  %1135 = vset.pattern.permute.xlu0 1
  %1136 = vperm.xlu0 %1135, %v186
  %v1137 = vpop.permute.xlu0 %1136
  %1139 = vset.pattern.permute.xlu0 1
  %1140 = vperm.xlu0 %1139, %v187
  %v1141 = vpop.permute.xlu0 %1140
  %1143 = vset.pattern.permute.xlu0 1
  %1144 = vperm.xlu0 %1143, %v188
  %v1145 = vpop.permute.xlu0 %1144
  %1147 = vset.pattern.permute.xlu0 1
  %1148 = vperm.xlu0 %1147, %v189
  %v1149 = vpop.permute.xlu0 %1148
  %v1151 = vmul.f32 %v833, %v751
  %v1152 = vmul.f32 %v837, %v752
  %v1153 = vmul.f32 %v841, %v753
  %v1154 = vmul.f32 %v845, %v754
  %v1155 = vmul.f32 %v849, %v755
  %v1156 = vmul.f32 %v853, %v756
  %v1157 = vmul.f32 %v857, %v757
  %v1158 = vmul.f32 %v861, %v758
  %v1159 = vmul.f32 %v865, %v759
  %v1160 = vmul.f32 %v869, %v760
  %v1161 = vmul.f32 %v873, %v761
  %v1162 = vmul.f32 %v877, %v762
  %v1163 = vmul.f32 %v881, %v763
  %v1164 = vmul.f32 %v885, %v764
  %v1165 = vmul.f32 %v889, %v765
  %v1166 = vmul.f32 %v893, %v766
  %v1167 = vmul.f32 %v897, %v767
  %v1168 = vmul.f32 %v901, %v768
  %v1169 = vmul.f32 %v905, %v769
  %v1170 = vmul.f32 %v909, %v770
  %v1171 = vmul.f32 %v913, %v771
  %v1172 = vmul.f32 %v917, %v772
  %v1173 = vmul.f32 %v921, %v773
  %v1174 = vmul.f32 %v925, %v774
  %v1175 = vmul.f32 %v929, %v775
  %v1176 = vmul.f32 %v933, %v776
  %v1177 = vmul.f32 %v937, %v777
  %v1178 = vmul.f32 %v941, %v778
  %v1179 = vmul.f32 %v945, %v779
  %v1180 = vmul.f32 %v949, %v780
  %v1181 = vmul.f32 %v953, %v781
  %v1182 = vmul.f32 %v957, %v782
  %v1183 = vmul.f32 %v961, %v783
  %v1184 = vmul.f32 %v965, %v784
  %v1185 = vmul.f32 %v969, %v785
  %v1186 = vmul.f32 %v973, %v786
  %v1187 = vmul.f32 %v977, %v787
  %v1188 = vmul.f32 %v981, %v788
  %v1189 = vmul.f32 %v985, %v789
  %v1190 = vmul.f32 %v989, %v790
  %v1191 = vmul.f32 %v993, %v791
  %v1192 = vmul.f32 %v997, %v792
  %v1193 = vmul.f32 %v1001, %v793
  %v1194 = vmul.f32 %v1005, %v794
  %v1195 = vmul.f32 %v1009, %v795
  %v1196 = vmul.f32 %v1013, %v796
  %v1197 = vmul.f32 %v1017, %v797
  %v1198 = vmul.f32 %v1021, %v798
  %v1199 = vmul.f32 %v1025, %v799
  %v1200 = vmul.f32 %v1029, %v800
  %v1201 = vmul.f32 %v1033, %v801
  %v1202 = vmul.f32 %v1037, %v802
  %v1203 = vmul.f32 %v1041, %v803
  %v1204 = vmul.f32 %v1045, %v804
  %v1205 = vmul.f32 %v1049, %v805
  %v1206 = vmul.f32 %v1053, %v806
  %v1207 = vmul.f32 %v1057, %v807
  %v1208 = vmul.f32 %v1061, %v808
  %v1209 = vmul.f32 %v1065, %v809
  %v1210 = vmul.f32 %v1069, %v810
  %v1211 = vmul.f32 %v1073, %v811
  %v1212 = vmul.f32 %v1077, %v812
  %v1213 = vmul.f32 %v1081, %v813
  %v1214 = vmul.f32 %v1085, %v814
  %v1215 = vmul.f32 %v1089, %v815
  %v1216 = vmul.f32 %v1093, %v816
  %v1217 = vmul.f32 %v1097, %v817
  %v1218 = vmul.f32 %v1101, %v818
  %v1219 = vmul.f32 %v1105, %v819
  %v1220 = vmul.f32 %v1109, %v820
  %v1221 = vmul.f32 %v1113, %v821
  %v1222 = vmul.f32 %v1117, %v822
  %v1223 = vmul.f32 %v1121, %v823
  %v1224 = vmul.f32 %v1125, %v824
  %v1225 = vmul.f32 %v1129, %v825
  %v1226 = vmul.f32 %v1133, %v826
  %v1227 = vmul.f32 %v1137, %v827
  %v1228 = vmul.f32 %v1141, %v828
  %v1229 = vmul.f32 %v1145, %v829
  %v1230 = vmul.f32 %v1149, %v830
  %v1231 = vadd.f32 %v670, %v1151
  %v1232 = vadd.f32 %v671, %v1152
  %v1233 = vadd.f32 %v672, %v1153
  %v1234 = vadd.f32 %v673, %v1154
  %v1235 = vadd.f32 %v674, %v1155
  %v1236 = vadd.f32 %v675, %v1156
  %v1237 = vadd.f32 %v676, %v1157
  %v1238 = vadd.f32 %v677, %v1158
  %v1239 = vadd.f32 %v678, %v1159
  %v1240 = vadd.f32 %v679, %v1160
  %v1241 = vadd.f32 %v680, %v1161
  %v1242 = vadd.f32 %v681, %v1162
  %v1243 = vadd.f32 %v682, %v1163
  %v1244 = vadd.f32 %v683, %v1164
  %v1245 = vadd.f32 %v684, %v1165
  %v1246 = vadd.f32 %v685, %v1166
  %v1247 = vadd.f32 %v686, %v1167
  %v1248 = vadd.f32 %v687, %v1168
  %v1249 = vadd.f32 %v688, %v1169
  %v1250 = vadd.f32 %v689, %v1170
  %v1251 = vadd.f32 %v690, %v1171
  %v1252 = vadd.f32 %v691, %v1172
  %v1253 = vadd.f32 %v692, %v1173
  %v1254 = vadd.f32 %v693, %v1174
  %v1255 = vadd.f32 %v694, %v1175
  %v1256 = vadd.f32 %v695, %v1176
  %v1257 = vadd.f32 %v696, %v1177
  %v1258 = vadd.f32 %v697, %v1178
  %v1259 = vadd.f32 %v698, %v1179
  %v1260 = vadd.f32 %v699, %v1180
  %v1261 = vadd.f32 %v700, %v1181
  %v1262 = vadd.f32 %v701, %v1182
  %v1263 = vadd.f32 %v702, %v1183
  %v1264 = vadd.f32 %v703, %v1184
  %v1265 = vadd.f32 %v704, %v1185
  %v1266 = vadd.f32 %v705, %v1186
  %v1267 = vadd.f32 %v706, %v1187
  %v1268 = vadd.f32 %v707, %v1188
  %v1269 = vadd.f32 %v708, %v1189
  %v1270 = vadd.f32 %v709, %v1190
  %v1271 = vadd.f32 %v710, %v1191
  %v1272 = vadd.f32 %v711, %v1192
  %v1273 = vadd.f32 %v712, %v1193
  %v1274 = vadd.f32 %v713, %v1194
  %v1275 = vadd.f32 %v714, %v1195
  %v1276 = vadd.f32 %v715, %v1196
  %v1277 = vadd.f32 %v716, %v1197
  %v1278 = vadd.f32 %v717, %v1198
  %v1279 = vadd.f32 %v718, %v1199
  %v1280 = vadd.f32 %v719, %v1200
  %v1281 = vadd.f32 %v720, %v1201
  %v1282 = vadd.f32 %v721, %v1202
  %v1283 = vadd.f32 %v722, %v1203
  %v1284 = vadd.f32 %v723, %v1204
  %v1285 = vadd.f32 %v724, %v1205
  %v1286 = vadd.f32 %v725, %v1206
  %v1287 = vadd.f32 %v726, %v1207
  %v1288 = vadd.f32 %v727, %v1208
  %v1289 = vadd.f32 %v728, %v1209
  %v1290 = vadd.f32 %v729, %v1210
  %v1291 = vadd.f32 %v730, %v1211
  %v1292 = vadd.f32 %v731, %v1212
  %v1293 = vadd.f32 %v732, %v1213
  %v1294 = vadd.f32 %v733, %v1214
  %v1295 = vadd.f32 %v734, %v1215
  %v1296 = vadd.f32 %v735, %v1216
  %v1297 = vadd.f32 %v736, %v1217
  %v1298 = vadd.f32 %v737, %v1218
  %v1299 = vadd.f32 %v738, %v1219
  %v1300 = vadd.f32 %v739, %v1220
  %v1301 = vadd.f32 %v740, %v1221
  %v1302 = vadd.f32 %v741, %v1222
  %v1303 = vadd.f32 %v742, %v1223
  %v1304 = vadd.f32 %v743, %v1224
  %v1305 = vadd.f32 %v744, %v1225
  %v1306 = vadd.f32 %v745, %v1226
  %v1307 = vadd.f32 %v746, %v1227
  %v1308 = vadd.f32 %v747, %v1228
  %v1309 = vadd.f32 %v748, %v1229
  %v1310 = vadd.f32 %v749, %v1230
  %s1311 = scalar_lea.vmem %s94, 1280
  %v1312 = vld [vmem:[%s1311] sm:$0xff]
  %v1313 = vld [vmem:[%s1311 + $0x8] sm:$0xff]
  %v1314 = vld [vmem:[%s1311 + $0x10] sm:$0xff]
  %v1315 = vld [vmem:[%s1311 + $0x18] sm:$0xff]
  %v1316 = vld [vmem:[%s1311 + $0x20] sm:$0xff]
  %v1317 = vld [vmem:[%s1311 + $0x28] sm:$0xff]
  %v1318 = vld [vmem:[%s1311 + $0x30] sm:$0xff]
  %v1319 = vld [vmem:[%s1311 + $0x38] sm:$0xff]
  %v1320 = vld [vmem:[%s1311 + $0x40] sm:$0xff]
  %v1321 = vld [vmem:[%s1311 + $0x48] sm:$0xff]
  %v1322 = vld [vmem:[%s1311 + $0x50] sm:$0xff]
  %v1323 = vld [vmem:[%s1311 + $0x58] sm:$0xff]
  %v1324 = vld [vmem:[%s1311 + $0x60] sm:$0xff]
  %v1325 = vld [vmem:[%s1311 + $0x68] sm:$0xff]
  %v1326 = vld [vmem:[%s1311 + $0x70] sm:$0xff]
  %v1327 = vld [vmem:[%s1311 + $0x78] sm:$0xff]
  %v1328 = vld [vmem:[%s1311 + $0x80] sm:$0xff]
  %v1329 = vld [vmem:[%s1311 + $0x88] sm:$0xff]
  %v1330 = vld [vmem:[%s1311 + $0x90] sm:$0xff]
  %v1331 = vld [vmem:[%s1311 + $0x98] sm:$0xff]
  %v1332 = vld [vmem:[%s1311 + $0xa0] sm:$0xff]
  %v1333 = vld [vmem:[%s1311 + $0xa8] sm:$0xff]
  %v1334 = vld [vmem:[%s1311 + $0xb0] sm:$0xff]
  %v1335 = vld [vmem:[%s1311 + $0xb8] sm:$0xff]
  %v1336 = vld [vmem:[%s1311 + $0xc0] sm:$0xff]
  %v1337 = vld [vmem:[%s1311 + $0xc8] sm:$0xff]
  %v1338 = vld [vmem:[%s1311 + $0xd0] sm:$0xff]
  %v1339 = vld [vmem:[%s1311 + $0xd8] sm:$0xff]
  %v1340 = vld [vmem:[%s1311 + $0xe0] sm:$0xff]
  %v1341 = vld [vmem:[%s1311 + $0xe8] sm:$0xff]
  %v1342 = vld [vmem:[%s1311 + $0xf0] sm:$0xff]
  %v1343 = vld [vmem:[%s1311 + $0xf8] sm:$0xff]
  %v1344 = vld [vmem:[%s1311 + $0x100] sm:$0xff]
  %v1345 = vld [vmem:[%s1311 + $0x108] sm:$0xff]
  %v1346 = vld [vmem:[%s1311 + $0x110] sm:$0xff]
  %v1347 = vld [vmem:[%s1311 + $0x118] sm:$0xff]
  %v1348 = vld [vmem:[%s1311 + $0x120] sm:$0xff]
  %v1349 = vld [vmem:[%s1311 + $0x128] sm:$0xff]
  %v1350 = vld [vmem:[%s1311 + $0x130] sm:$0xff]
  %v1351 = vld [vmem:[%s1311 + $0x138] sm:$0xff]
  %v1352 = vld [vmem:[%s1311 + $0x140] sm:$0xff]
  %v1353 = vld [vmem:[%s1311 + $0x148] sm:$0xff]
  %v1354 = vld [vmem:[%s1311 + $0x150] sm:$0xff]
  %v1355 = vld [vmem:[%s1311 + $0x158] sm:$0xff]
  %v1356 = vld [vmem:[%s1311 + $0x160] sm:$0xff]
  %v1357 = vld [vmem:[%s1311 + $0x168] sm:$0xff]
  %v1358 = vld [vmem:[%s1311 + $0x170] sm:$0xff]
  %v1359 = vld [vmem:[%s1311 + $0x178] sm:$0xff]
  %v1360 = vld [vmem:[%s1311 + $0x180] sm:$0xff]
  %v1361 = vld [vmem:[%s1311 + $0x188] sm:$0xff]
  %v1362 = vld [vmem:[%s1311 + $0x190] sm:$0xff]
  %v1363 = vld [vmem:[%s1311 + $0x198] sm:$0xff]
  %v1364 = vld [vmem:[%s1311 + $0x1a0] sm:$0xff]
  %v1365 = vld [vmem:[%s1311 + $0x1a8] sm:$0xff]
  %v1366 = vld [vmem:[%s1311 + $0x1b0] sm:$0xff]
  %v1367 = vld [vmem:[%s1311 + $0x1b8] sm:$0xff]
  %v1368 = vld [vmem:[%s1311 + $0x1c0] sm:$0xff]
  %v1369 = vld [vmem:[%s1311 + $0x1c8] sm:$0xff]
  %v1370 = vld [vmem:[%s1311 + $0x1d0] sm:$0xff]
  %v1371 = vld [vmem:[%s1311 + $0x1d8] sm:$0xff]
  %v1372 = vld [vmem:[%s1311 + $0x1e0] sm:$0xff]
  %v1373 = vld [vmem:[%s1311 + $0x1e8] sm:$0xff]
  %v1374 = vld [vmem:[%s1311 + $0x1f0] sm:$0xff]
  %v1375 = vld [vmem:[%s1311 + $0x1f8] sm:$0xff]
  %v1376 = vld [vmem:[%s1311 + $0x200] sm:$0xff]
  %v1377 = vld [vmem:[%s1311 + $0x208] sm:$0xff]
  %v1378 = vld [vmem:[%s1311 + $0x210] sm:$0xff]
  %v1379 = vld [vmem:[%s1311 + $0x218] sm:$0xff]
  %v1380 = vld [vmem:[%s1311 + $0x220] sm:$0xff]
  %v1381 = vld [vmem:[%s1311 + $0x228] sm:$0xff]
  %v1382 = vld [vmem:[%s1311 + $0x230] sm:$0xff]
  %v1383 = vld [vmem:[%s1311 + $0x238] sm:$0xff]
  %v1384 = vld [vmem:[%s1311 + $0x240] sm:$0xff]
  %v1385 = vld [vmem:[%s1311 + $0x248] sm:$0xff]
  %v1386 = vld [vmem:[%s1311 + $0x250] sm:$0xff]
  %v1387 = vld [vmem:[%s1311 + $0x258] sm:$0xff]
  %v1388 = vld [vmem:[%s1311 + $0x260] sm:$0xff]
  %v1389 = vld [vmem:[%s1311 + $0x268] sm:$0xff]
  %v1390 = vld [vmem:[%s1311 + $0x270] sm:$0xff]
  %v1391 = vld [vmem:[%s1311 + $0x278] sm:$0xff]
  %1392 = vset.pattern.permute.xlu0 2
  %1393 = vperm.xlu0 %1392, %v110
  %v1394 = vpop.permute.xlu0 %1393
  %1396 = vset.pattern.permute.xlu0 2
  %1397 = vperm.xlu0 %1396, %v111
  %v1398 = vpop.permute.xlu0 %1397
  %1400 = vset.pattern.permute.xlu0 2
  %1401 = vperm.xlu0 %1400, %v112
  %v1402 = vpop.permute.xlu0 %1401
  %1404 = vset.pattern.permute.xlu0 2
  %1405 = vperm.xlu0 %1404, %v113
  %v1406 = vpop.permute.xlu0 %1405
  %1408 = vset.pattern.permute.xlu0 2
  %1409 = vperm.xlu0 %1408, %v114
  %v1410 = vpop.permute.xlu0 %1409
  %1412 = vset.pattern.permute.xlu0 2
  %1413 = vperm.xlu0 %1412, %v115
  %v1414 = vpop.permute.xlu0 %1413
  %1416 = vset.pattern.permute.xlu0 2
  %1417 = vperm.xlu0 %1416, %v116
  %v1418 = vpop.permute.xlu0 %1417
  %1420 = vset.pattern.permute.xlu0 2
  %1421 = vperm.xlu0 %1420, %v117
  %v1422 = vpop.permute.xlu0 %1421
  %1424 = vset.pattern.permute.xlu0 2
  %1425 = vperm.xlu0 %1424, %v118
  %v1426 = vpop.permute.xlu0 %1425
  %1428 = vset.pattern.permute.xlu0 2
  %1429 = vperm.xlu0 %1428, %v119
  %v1430 = vpop.permute.xlu0 %1429
  %1432 = vset.pattern.permute.xlu0 2
  %1433 = vperm.xlu0 %1432, %v120
  %v1434 = vpop.permute.xlu0 %1433
  %1436 = vset.pattern.permute.xlu0 2
  %1437 = vperm.xlu0 %1436, %v121
  %v1438 = vpop.permute.xlu0 %1437
  %1440 = vset.pattern.permute.xlu0 2
  %1441 = vperm.xlu0 %1440, %v122
  %v1442 = vpop.permute.xlu0 %1441
  %1444 = vset.pattern.permute.xlu0 2
  %1445 = vperm.xlu0 %1444, %v123
  %v1446 = vpop.permute.xlu0 %1445
  %1448 = vset.pattern.permute.xlu0 2
  %1449 = vperm.xlu0 %1448, %v124
  %v1450 = vpop.permute.xlu0 %1449
  %1452 = vset.pattern.permute.xlu0 2
  %1453 = vperm.xlu0 %1452, %v125
  %v1454 = vpop.permute.xlu0 %1453
  %1456 = vset.pattern.permute.xlu0 2
  %1457 = vperm.xlu0 %1456, %v126
  %v1458 = vpop.permute.xlu0 %1457
  %1460 = vset.pattern.permute.xlu0 2
  %1461 = vperm.xlu0 %1460, %v127
  %v1462 = vpop.permute.xlu0 %1461
  %1464 = vset.pattern.permute.xlu0 2
  %1465 = vperm.xlu0 %1464, %v128
  %v1466 = vpop.permute.xlu0 %1465
  %1468 = vset.pattern.permute.xlu0 2
  %1469 = vperm.xlu0 %1468, %v129
  %v1470 = vpop.permute.xlu0 %1469
  %1472 = vset.pattern.permute.xlu0 2
  %1473 = vperm.xlu0 %1472, %v130
  %v1474 = vpop.permute.xlu0 %1473
  %1476 = vset.pattern.permute.xlu0 2
  %1477 = vperm.xlu0 %1476, %v131
  %v1478 = vpop.permute.xlu0 %1477
  %1480 = vset.pattern.permute.xlu0 2
  %1481 = vperm.xlu0 %1480, %v132
  %v1482 = vpop.permute.xlu0 %1481
  %1484 = vset.pattern.permute.xlu0 2
  %1485 = vperm.xlu0 %1484, %v133
  %v1486 = vpop.permute.xlu0 %1485
  %1488 = vset.pattern.permute.xlu0 2
  %1489 = vperm.xlu0 %1488, %v134
  %v1490 = vpop.permute.xlu0 %1489
  %1492 = vset.pattern.permute.xlu0 2
  %1493 = vperm.xlu0 %1492, %v135
  %v1494 = vpop.permute.xlu0 %1493
  %1496 = vset.pattern.permute.xlu0 2
  %1497 = vperm.xlu0 %1496, %v136
  %v1498 = vpop.permute.xlu0 %1497
  %1500 = vset.pattern.permute.xlu0 2
  %1501 = vperm.xlu0 %1500, %v137
  %v1502 = vpop.permute.xlu0 %1501
  %1504 = vset.pattern.permute.xlu0 2
  %1505 = vperm.xlu0 %1504, %v138
  %v1506 = vpop.permute.xlu0 %1505
  %1508 = vset.pattern.permute.xlu0 2
  %1509 = vperm.xlu0 %1508, %v139
  %v1510 = vpop.permute.xlu0 %1509
  %1512 = vset.pattern.permute.xlu0 2
  %1513 = vperm.xlu0 %1512, %v140
  %v1514 = vpop.permute.xlu0 %1513
  %1516 = vset.pattern.permute.xlu0 2
  %1517 = vperm.xlu0 %1516, %v141
  %v1518 = vpop.permute.xlu0 %1517
  %1520 = vset.pattern.permute.xlu0 2
  %1521 = vperm.xlu0 %1520, %v142
  %v1522 = vpop.permute.xlu0 %1521
  %1524 = vset.pattern.permute.xlu0 2
  %1525 = vperm.xlu0 %1524, %v143
  %v1526 = vpop.permute.xlu0 %1525
  %1528 = vset.pattern.permute.xlu0 2
  %1529 = vperm.xlu0 %1528, %v144
  %v1530 = vpop.permute.xlu0 %1529
  %1532 = vset.pattern.permute.xlu0 2
  %1533 = vperm.xlu0 %1532, %v145
  %v1534 = vpop.permute.xlu0 %1533
  %1536 = vset.pattern.permute.xlu0 2
  %1537 = vperm.xlu0 %1536, %v146
  %v1538 = vpop.permute.xlu0 %1537
  %1540 = vset.pattern.permute.xlu0 2
  %1541 = vperm.xlu0 %1540, %v147
  %v1542 = vpop.permute.xlu0 %1541
  %1544 = vset.pattern.permute.xlu0 2
  %1545 = vperm.xlu0 %1544, %v148
  %v1546 = vpop.permute.xlu0 %1545
  %1548 = vset.pattern.permute.xlu0 2
  %1549 = vperm.xlu0 %1548, %v149
  %v1550 = vpop.permute.xlu0 %1549
  %1552 = vset.pattern.permute.xlu0 2
  %1553 = vperm.xlu0 %1552, %v150
  %v1554 = vpop.permute.xlu0 %1553
  %1556 = vset.pattern.permute.xlu0 2
  %1557 = vperm.xlu0 %1556, %v151
  %v1558 = vpop.permute.xlu0 %1557
  %1560 = vset.pattern.permute.xlu0 2
  %1561 = vperm.xlu0 %1560, %v152
  %v1562 = vpop.permute.xlu0 %1561
  %1564 = vset.pattern.permute.xlu0 2
  %1565 = vperm.xlu0 %1564, %v153
  %v1566 = vpop.permute.xlu0 %1565
  %1568 = vset.pattern.permute.xlu0 2
  %1569 = vperm.xlu0 %1568, %v154
  %v1570 = vpop.permute.xlu0 %1569
  %1572 = vset.pattern.permute.xlu0 2
  %1573 = vperm.xlu0 %1572, %v155
  %v1574 = vpop.permute.xlu0 %1573
  %1576 = vset.pattern.permute.xlu0 2
  %1577 = vperm.xlu0 %1576, %v156
  %v1578 = vpop.permute.xlu0 %1577
  %1580 = vset.pattern.permute.xlu0 2
  %1581 = vperm.xlu0 %1580, %v157
  %v1582 = vpop.permute.xlu0 %1581
  %1584 = vset.pattern.permute.xlu0 2
  %1585 = vperm.xlu0 %1584, %v158
  %v1586 = vpop.permute.xlu0 %1585
  %1588 = vset.pattern.permute.xlu0 2
  %1589 = vperm.xlu0 %1588, %v159
  %v1590 = vpop.permute.xlu0 %1589
  %1592 = vset.pattern.permute.xlu0 2
  %1593 = vperm.xlu0 %1592, %v160
  %v1594 = vpop.permute.xlu0 %1593
  %1596 = vset.pattern.permute.xlu0 2
  %1597 = vperm.xlu0 %1596, %v161
  %v1598 = vpop.permute.xlu0 %1597
  %1600 = vset.pattern.permute.xlu0 2
  %1601 = vperm.xlu0 %1600, %v162
  %v1602 = vpop.permute.xlu0 %1601
  %1604 = vset.pattern.permute.xlu0 2
  %1605 = vperm.xlu0 %1604, %v163
  %v1606 = vpop.permute.xlu0 %1605
  %1608 = vset.pattern.permute.xlu0 2
  %1609 = vperm.xlu0 %1608, %v164
  %v1610 = vpop.permute.xlu0 %1609
  %1612 = vset.pattern.permute.xlu0 2
  %1613 = vperm.xlu0 %1612, %v165
  %v1614 = vpop.permute.xlu0 %1613
  %1616 = vset.pattern.permute.xlu0 2
  %1617 = vperm.xlu0 %1616, %v166
  %v1618 = vpop.permute.xlu0 %1617
  %1620 = vset.pattern.permute.xlu0 2
  %1621 = vperm.xlu0 %1620, %v167
  %v1622 = vpop.permute.xlu0 %1621
  %1624 = vset.pattern.permute.xlu0 2
  %1625 = vperm.xlu0 %1624, %v168
  %v1626 = vpop.permute.xlu0 %1625
  %1628 = vset.pattern.permute.xlu0 2
  %1629 = vperm.xlu0 %1628, %v169
  %v1630 = vpop.permute.xlu0 %1629
  %1632 = vset.pattern.permute.xlu0 2
  %1633 = vperm.xlu0 %1632, %v170
  %v1634 = vpop.permute.xlu0 %1633
  %1636 = vset.pattern.permute.xlu0 2
  %1637 = vperm.xlu0 %1636, %v171
  %v1638 = vpop.permute.xlu0 %1637
  %1640 = vset.pattern.permute.xlu0 2
  %1641 = vperm.xlu0 %1640, %v172
  %v1642 = vpop.permute.xlu0 %1641
  %1644 = vset.pattern.permute.xlu0 2
  %1645 = vperm.xlu0 %1644, %v173
  %v1646 = vpop.permute.xlu0 %1645
  %1648 = vset.pattern.permute.xlu0 2
  %1649 = vperm.xlu0 %1648, %v174
  %v1650 = vpop.permute.xlu0 %1649
  %1652 = vset.pattern.permute.xlu0 2
  %1653 = vperm.xlu0 %1652, %v175
  %v1654 = vpop.permute.xlu0 %1653
  %1656 = vset.pattern.permute.xlu0 2
  %1657 = vperm.xlu0 %1656, %v176
  %v1658 = vpop.permute.xlu0 %1657
  %1660 = vset.pattern.permute.xlu0 2
  %1661 = vperm.xlu0 %1660, %v177
  %v1662 = vpop.permute.xlu0 %1661
  %1664 = vset.pattern.permute.xlu0 2
  %1665 = vperm.xlu0 %1664, %v178
  %v1666 = vpop.permute.xlu0 %1665
  %1668 = vset.pattern.permute.xlu0 2
  %1669 = vperm.xlu0 %1668, %v179
  %v1670 = vpop.permute.xlu0 %1669
  %1672 = vset.pattern.permute.xlu0 2
  %1673 = vperm.xlu0 %1672, %v180
  %v1674 = vpop.permute.xlu0 %1673
  %1676 = vset.pattern.permute.xlu0 2
  %1677 = vperm.xlu0 %1676, %v181
  %v1678 = vpop.permute.xlu0 %1677
  %1680 = vset.pattern.permute.xlu0 2
  %1681 = vperm.xlu0 %1680, %v182
  %v1682 = vpop.permute.xlu0 %1681
  %1684 = vset.pattern.permute.xlu0 2
  %1685 = vperm.xlu0 %1684, %v183
  %v1686 = vpop.permute.xlu0 %1685
  %1688 = vset.pattern.permute.xlu0 2
  %1689 = vperm.xlu0 %1688, %v184
  %v1690 = vpop.permute.xlu0 %1689
  %1692 = vset.pattern.permute.xlu0 2
  %1693 = vperm.xlu0 %1692, %v185
  %v1694 = vpop.permute.xlu0 %1693
  %1696 = vset.pattern.permute.xlu0 2
  %1697 = vperm.xlu0 %1696, %v186
  %v1698 = vpop.permute.xlu0 %1697
  %1700 = vset.pattern.permute.xlu0 2
  %1701 = vperm.xlu0 %1700, %v187
  %v1702 = vpop.permute.xlu0 %1701
  %1704 = vset.pattern.permute.xlu0 2
  %1705 = vperm.xlu0 %1704, %v188
  %v1706 = vpop.permute.xlu0 %1705
  %1708 = vset.pattern.permute.xlu0 2
  %1709 = vperm.xlu0 %1708, %v189
  %v1710 = vpop.permute.xlu0 %1709
  %v1712 = vmul.f32 %v1394, %v1312
  %v1713 = vmul.f32 %v1398, %v1313
  %v1714 = vmul.f32 %v1402, %v1314
  %v1715 = vmul.f32 %v1406, %v1315
  %v1716 = vmul.f32 %v1410, %v1316
  %v1717 = vmul.f32 %v1414, %v1317
  %v1718 = vmul.f32 %v1418, %v1318
  %v1719 = vmul.f32 %v1422, %v1319
  %v1720 = vmul.f32 %v1426, %v1320
  %v1721 = vmul.f32 %v1430, %v1321
  %v1722 = vmul.f32 %v1434, %v1322
  %v1723 = vmul.f32 %v1438, %v1323
  %v1724 = vmul.f32 %v1442, %v1324
  %v1725 = vmul.f32 %v1446, %v1325
  %v1726 = vmul.f32 %v1450, %v1326
  %v1727 = vmul.f32 %v1454, %v1327
  %v1728 = vmul.f32 %v1458, %v1328
  %v1729 = vmul.f32 %v1462, %v1329
  %v1730 = vmul.f32 %v1466, %v1330
  %v1731 = vmul.f32 %v1470, %v1331
  %v1732 = vmul.f32 %v1474, %v1332
  %v1733 = vmul.f32 %v1478, %v1333
  %v1734 = vmul.f32 %v1482, %v1334
  %v1735 = vmul.f32 %v1486, %v1335
  %v1736 = vmul.f32 %v1490, %v1336
  %v1737 = vmul.f32 %v1494, %v1337
  %v1738 = vmul.f32 %v1498, %v1338
  %v1739 = vmul.f32 %v1502, %v1339
  %v1740 = vmul.f32 %v1506, %v1340
  %v1741 = vmul.f32 %v1510, %v1341
  %v1742 = vmul.f32 %v1514, %v1342
  %v1743 = vmul.f32 %v1518, %v1343
  %v1744 = vmul.f32 %v1522, %v1344
  %v1745 = vmul.f32 %v1526, %v1345
  %v1746 = vmul.f32 %v1530, %v1346
  %v1747 = vmul.f32 %v1534, %v1347
  %v1748 = vmul.f32 %v1538, %v1348
  %v1749 = vmul.f32 %v1542, %v1349
  %v1750 = vmul.f32 %v1546, %v1350
  %v1751 = vmul.f32 %v1550, %v1351
  %v1752 = vmul.f32 %v1554, %v1352
  %v1753 = vmul.f32 %v1558, %v1353
  %v1754 = vmul.f32 %v1562, %v1354
  %v1755 = vmul.f32 %v1566, %v1355
  %v1756 = vmul.f32 %v1570, %v1356
  %v1757 = vmul.f32 %v1574, %v1357
  %v1758 = vmul.f32 %v1578, %v1358
  %v1759 = vmul.f32 %v1582, %v1359
  %v1760 = vmul.f32 %v1586, %v1360
  %v1761 = vmul.f32 %v1590, %v1361
  %v1762 = vmul.f32 %v1594, %v1362
  %v1763 = vmul.f32 %v1598, %v1363
  %v1764 = vmul.f32 %v1602, %v1364
  %v1765 = vmul.f32 %v1606, %v1365
  %v1766 = vmul.f32 %v1610, %v1366
  %v1767 = vmul.f32 %v1614, %v1367
  %v1768 = vmul.f32 %v1618, %v1368
  %v1769 = vmul.f32 %v1622, %v1369
  %v1770 = vmul.f32 %v1626, %v1370
  %v1771 = vmul.f32 %v1630, %v1371
  %v1772 = vmul.f32 %v1634, %v1372
  %v1773 = vmul.f32 %v1638, %v1373
  %v1774 = vmul.f32 %v1642, %v1374
  %v1775 = vmul.f32 %v1646, %v1375
  %v1776 = vmul.f32 %v1650, %v1376
  %v1777 = vmul.f32 %v1654, %v1377
  %v1778 = vmul.f32 %v1658, %v1378
  %v1779 = vmul.f32 %v1662, %v1379
  %v1780 = vmul.f32 %v1666, %v1380
  %v1781 = vmul.f32 %v1670, %v1381
  %v1782 = vmul.f32 %v1674, %v1382
  %v1783 = vmul.f32 %v1678, %v1383
  %v1784 = vmul.f32 %v1682, %v1384
  %v1785 = vmul.f32 %v1686, %v1385
  %v1786 = vmul.f32 %v1690, %v1386
  %v1787 = vmul.f32 %v1694, %v1387
  %v1788 = vmul.f32 %v1698, %v1388
  %v1789 = vmul.f32 %v1702, %v1389
  %v1790 = vmul.f32 %v1706, %v1390
  %v1791 = vmul.f32 %v1710, %v1391
  %v1792 = vadd.f32 %v1231, %v1712
  %v1793 = vadd.f32 %v1232, %v1713
  %v1794 = vadd.f32 %v1233, %v1714
  %v1795 = vadd.f32 %v1234, %v1715
  %v1796 = vadd.f32 %v1235, %v1716
  %v1797 = vadd.f32 %v1236, %v1717
  %v1798 = vadd.f32 %v1237, %v1718
  %v1799 = vadd.f32 %v1238, %v1719
  %v1800 = vadd.f32 %v1239, %v1720
  %v1801 = vadd.f32 %v1240, %v1721
  %v1802 = vadd.f32 %v1241, %v1722
  %v1803 = vadd.f32 %v1242, %v1723
  %v1804 = vadd.f32 %v1243, %v1724
  %v1805 = vadd.f32 %v1244, %v1725
  %v1806 = vadd.f32 %v1245, %v1726
  %v1807 = vadd.f32 %v1246, %v1727
  %v1808 = vadd.f32 %v1247, %v1728
  %v1809 = vadd.f32 %v1248, %v1729
  %v1810 = vadd.f32 %v1249, %v1730
  %v1811 = vadd.f32 %v1250, %v1731
  %v1812 = vadd.f32 %v1251, %v1732
  %v1813 = vadd.f32 %v1252, %v1733
  %v1814 = vadd.f32 %v1253, %v1734
  %v1815 = vadd.f32 %v1254, %v1735
  %v1816 = vadd.f32 %v1255, %v1736
  %v1817 = vadd.f32 %v1256, %v1737
  %v1818 = vadd.f32 %v1257, %v1738
  %v1819 = vadd.f32 %v1258, %v1739
  %v1820 = vadd.f32 %v1259, %v1740
  %v1821 = vadd.f32 %v1260, %v1741
  %v1822 = vadd.f32 %v1261, %v1742
  %v1823 = vadd.f32 %v1262, %v1743
  %v1824 = vadd.f32 %v1263, %v1744
  %v1825 = vadd.f32 %v1264, %v1745
  %v1826 = vadd.f32 %v1265, %v1746
  %v1827 = vadd.f32 %v1266, %v1747
  %v1828 = vadd.f32 %v1267, %v1748
  %v1829 = vadd.f32 %v1268, %v1749
  %v1830 = vadd.f32 %v1269, %v1750
  %v1831 = vadd.f32 %v1270, %v1751
  %v1832 = vadd.f32 %v1271, %v1752
  %v1833 = vadd.f32 %v1272, %v1753
  %v1834 = vadd.f32 %v1273, %v1754
  %v1835 = vadd.f32 %v1274, %v1755
  %v1836 = vadd.f32 %v1275, %v1756
  %v1837 = vadd.f32 %v1276, %v1757
  %v1838 = vadd.f32 %v1277, %v1758
  %v1839 = vadd.f32 %v1278, %v1759
  %v1840 = vadd.f32 %v1279, %v1760
  %v1841 = vadd.f32 %v1280, %v1761
  %v1842 = vadd.f32 %v1281, %v1762
  %v1843 = vadd.f32 %v1282, %v1763
  %v1844 = vadd.f32 %v1283, %v1764
  %v1845 = vadd.f32 %v1284, %v1765
  %v1846 = vadd.f32 %v1285, %v1766
  %v1847 = vadd.f32 %v1286, %v1767
  %v1848 = vadd.f32 %v1287, %v1768
  %v1849 = vadd.f32 %v1288, %v1769
  %v1850 = vadd.f32 %v1289, %v1770
  %v1851 = vadd.f32 %v1290, %v1771
  %v1852 = vadd.f32 %v1291, %v1772
  %v1853 = vadd.f32 %v1292, %v1773
  %v1854 = vadd.f32 %v1293, %v1774
  %v1855 = vadd.f32 %v1294, %v1775
  %v1856 = vadd.f32 %v1295, %v1776
  %v1857 = vadd.f32 %v1296, %v1777
  %v1858 = vadd.f32 %v1297, %v1778
  %v1859 = vadd.f32 %v1298, %v1779
  %v1860 = vadd.f32 %v1299, %v1780
  %v1861 = vadd.f32 %v1300, %v1781
  %v1862 = vadd.f32 %v1301, %v1782
  %v1863 = vadd.f32 %v1302, %v1783
  %v1864 = vadd.f32 %v1303, %v1784
  %v1865 = vadd.f32 %v1304, %v1785
  %v1866 = vadd.f32 %v1305, %v1786
  %v1867 = vadd.f32 %v1306, %v1787
  %v1868 = vadd.f32 %v1307, %v1788
  %v1869 = vadd.f32 %v1308, %v1789
  %v1870 = vadd.f32 %v1309, %v1790
  %v1871 = vadd.f32 %v1310, %v1791
  %v1872 = vld [vmem:[%s102] sm:$0xff]
  %v1873 = vld [vmem:[%s102 + $0x8] sm:$0xff]
  %v1874 = vld [vmem:[%s102 + $0x10] sm:$0xff]
  %v1875 = vld [vmem:[%s102 + $0x18] sm:$0xff]
  %v1876 = vld [vmem:[%s102 + $0x20] sm:$0xff]
  %v1877 = vld [vmem:[%s102 + $0x28] sm:$0xff]
  %v1878 = vld [vmem:[%s102 + $0x30] sm:$0xff]
  %v1879 = vld [vmem:[%s102 + $0x38] sm:$0xff]
  %v1880 = vld [vmem:[%s102 + $0x40] sm:$0xff]
  %v1881 = vld [vmem:[%s102 + $0x48] sm:$0xff]
  %v1882 = vld [vmem:[%s102 + $0x50] sm:$0xff]
  %v1883 = vld [vmem:[%s102 + $0x58] sm:$0xff]
  %v1884 = vld [vmem:[%s102 + $0x60] sm:$0xff]
  %v1885 = vld [vmem:[%s102 + $0x68] sm:$0xff]
  %v1886 = vld [vmem:[%s102 + $0x70] sm:$0xff]
  %v1887 = vld [vmem:[%s102 + $0x78] sm:$0xff]
  %v1888 = vld [vmem:[%s102 + $0x80] sm:$0xff]
  %v1889 = vld [vmem:[%s102 + $0x88] sm:$0xff]
  %v1890 = vld [vmem:[%s102 + $0x90] sm:$0xff]
  %v1891 = vld [vmem:[%s102 + $0x98] sm:$0xff]
  %v1892 = vld [vmem:[%s102 + $0xa0] sm:$0xff]
  %v1893 = vld [vmem:[%s102 + $0xa8] sm:$0xff]
  %v1894 = vld [vmem:[%s102 + $0xb0] sm:$0xff]
  %v1895 = vld [vmem:[%s102 + $0xb8] sm:$0xff]
  %v1896 = vld [vmem:[%s102 + $0xc0] sm:$0xff]
  %v1897 = vld [vmem:[%s102 + $0xc8] sm:$0xff]
  %v1898 = vld [vmem:[%s102 + $0xd0] sm:$0xff]
  %v1899 = vld [vmem:[%s102 + $0xd8] sm:$0xff]
  %v1900 = vld [vmem:[%s102 + $0xe0] sm:$0xff]
  %v1901 = vld [vmem:[%s102 + $0xe8] sm:$0xff]
  %v1902 = vld [vmem:[%s102 + $0xf0] sm:$0xff]
  %v1903 = vld [vmem:[%s102 + $0xf8] sm:$0xff]
  %v1904 = vld [vmem:[%s102 + $0x100] sm:$0xff]
  %v1905 = vld [vmem:[%s102 + $0x108] sm:$0xff]
  %v1906 = vld [vmem:[%s102 + $0x110] sm:$0xff]
  %v1907 = vld [vmem:[%s102 + $0x118] sm:$0xff]
  %v1908 = vld [vmem:[%s102 + $0x120] sm:$0xff]
  %v1909 = vld [vmem:[%s102 + $0x128] sm:$0xff]
  %v1910 = vld [vmem:[%s102 + $0x130] sm:$0xff]
  %v1911 = vld [vmem:[%s102 + $0x138] sm:$0xff]
  %v1912 = vld [vmem:[%s102 + $0x140] sm:$0xff]
  %v1913 = vld [vmem:[%s102 + $0x148] sm:$0xff]
  %v1914 = vld [vmem:[%s102 + $0x150] sm:$0xff]
  %v1915 = vld [vmem:[%s102 + $0x158] sm:$0xff]
  %v1916 = vld [vmem:[%s102 + $0x160] sm:$0xff]
  %v1917 = vld [vmem:[%s102 + $0x168] sm:$0xff]
  %v1918 = vld [vmem:[%s102 + $0x170] sm:$0xff]
  %v1919 = vld [vmem:[%s102 + $0x178] sm:$0xff]
  %v1920 = vld [vmem:[%s102 + $0x180] sm:$0xff]
  %v1921 = vld [vmem:[%s102 + $0x188] sm:$0xff]
  %v1922 = vld [vmem:[%s102 + $0x190] sm:$0xff]
  %v1923 = vld [vmem:[%s102 + $0x198] sm:$0xff]
  %v1924 = vld [vmem:[%s102 + $0x1a0] sm:$0xff]
  %v1925 = vld [vmem:[%s102 + $0x1a8] sm:$0xff]
  %v1926 = vld [vmem:[%s102 + $0x1b0] sm:$0xff]
  %v1927 = vld [vmem:[%s102 + $0x1b8] sm:$0xff]
  %v1928 = vld [vmem:[%s102 + $0x1c0] sm:$0xff]
  %v1929 = vld [vmem:[%s102 + $0x1c8] sm:$0xff]
  %v1930 = vld [vmem:[%s102 + $0x1d0] sm:$0xff]
  %v1931 = vld [vmem:[%s102 + $0x1d8] sm:$0xff]
  %v1932 = vld [vmem:[%s102 + $0x1e0] sm:$0xff]
  %v1933 = vld [vmem:[%s102 + $0x1e8] sm:$0xff]
  %v1934 = vld [vmem:[%s102 + $0x1f0] sm:$0xff]
  %v1935 = vld [vmem:[%s102 + $0x1f8] sm:$0xff]
  %v1936 = vld [vmem:[%s102 + $0x200] sm:$0xff]
  %v1937 = vld [vmem:[%s102 + $0x208] sm:$0xff]
  %v1938 = vld [vmem:[%s102 + $0x210] sm:$0xff]
  %v1939 = vld [vmem:[%s102 + $0x218] sm:$0xff]
  %v1940 = vld [vmem:[%s102 + $0x220] sm:$0xff]
  %v1941 = vld [vmem:[%s102 + $0x228] sm:$0xff]
  %v1942 = vld [vmem:[%s102 + $0x230] sm:$0xff]
  %v1943 = vld [vmem:[%s102 + $0x238] sm:$0xff]
  %v1944 = vld [vmem:[%s102 + $0x240] sm:$0xff]
  %v1945 = vld [vmem:[%s102 + $0x248] sm:$0xff]
  %v1946 = vld [vmem:[%s102 + $0x250] sm:$0xff]
  %v1947 = vld [vmem:[%s102 + $0x258] sm:$0xff]
  %v1948 = vld [vmem:[%s102 + $0x260] sm:$0xff]
  %v1949 = vld [vmem:[%s102 + $0x268] sm:$0xff]
  %v1950 = vld [vmem:[%s102 + $0x270] sm:$0xff]
  %v1951 = vld [vmem:[%s102 + $0x278] sm:$0xff]
  %v1952 = vsub.f32 %v1792, %v1872
  %v1953 = vsub.f32 %v1793, %v1873
  %v1954 = vsub.f32 %v1794, %v1874
  %v1955 = vsub.f32 %v1795, %v1875
  %v1956 = vsub.f32 %v1796, %v1876
  %v1957 = vsub.f32 %v1797, %v1877
  %v1958 = vsub.f32 %v1798, %v1878
  %v1959 = vsub.f32 %v1799, %v1879
  %v1960 = vsub.f32 %v1800, %v1880
  %v1961 = vsub.f32 %v1801, %v1881
  %v1962 = vsub.f32 %v1802, %v1882
  %v1963 = vsub.f32 %v1803, %v1883
  %v1964 = vsub.f32 %v1804, %v1884
  %v1965 = vsub.f32 %v1805, %v1885
  %v1966 = vsub.f32 %v1806, %v1886
  %v1967 = vsub.f32 %v1807, %v1887
  %v1968 = vsub.f32 %v1808, %v1888
  %v1969 = vsub.f32 %v1809, %v1889
  %v1970 = vsub.f32 %v1810, %v1890
  %v1971 = vsub.f32 %v1811, %v1891
  %v1972 = vsub.f32 %v1812, %v1892
  %v1973 = vsub.f32 %v1813, %v1893
  %v1974 = vsub.f32 %v1814, %v1894
  %v1975 = vsub.f32 %v1815, %v1895
  %v1976 = vsub.f32 %v1816, %v1896
  %v1977 = vsub.f32 %v1817, %v1897
  %v1978 = vsub.f32 %v1818, %v1898
  %v1979 = vsub.f32 %v1819, %v1899
  %v1980 = vsub.f32 %v1820, %v1900
  %v1981 = vsub.f32 %v1821, %v1901
  %v1982 = vsub.f32 %v1822, %v1902
  %v1983 = vsub.f32 %v1823, %v1903
  %v1984 = vsub.f32 %v1824, %v1904
  %v1985 = vsub.f32 %v1825, %v1905
  %v1986 = vsub.f32 %v1826, %v1906
  %v1987 = vsub.f32 %v1827, %v1907
  %v1988 = vsub.f32 %v1828, %v1908
  %v1989 = vsub.f32 %v1829, %v1909
  %v1990 = vsub.f32 %v1830, %v1910
  %v1991 = vsub.f32 %v1831, %v1911
  %v1992 = vsub.f32 %v1832, %v1912
  %v1993 = vsub.f32 %v1833, %v1913
  %v1994 = vsub.f32 %v1834, %v1914
  %v1995 = vsub.f32 %v1835, %v1915
  %v1996 = vsub.f32 %v1836, %v1916
  %v1997 = vsub.f32 %v1837, %v1917
  %v1998 = vsub.f32 %v1838, %v1918
  %v1999 = vsub.f32 %v1839, %v1919
  %v2000 = vsub.f32 %v1840, %v1920
  %v2001 = vsub.f32 %v1841, %v1921
  %v2002 = vsub.f32 %v1842, %v1922
  %v2003 = vsub.f32 %v1843, %v1923
  %v2004 = vsub.f32 %v1844, %v1924
  %v2005 = vsub.f32 %v1845, %v1925
  %v2006 = vsub.f32 %v1846, %v1926
  %v2007 = vsub.f32 %v1847, %v1927
  %v2008 = vsub.f32 %v1848, %v1928
  %v2009 = vsub.f32 %v1849, %v1929
  %v2010 = vsub.f32 %v1850, %v1930
  %v2011 = vsub.f32 %v1851, %v1931
  %v2012 = vsub.f32 %v1852, %v1932
  %v2013 = vsub.f32 %v1853, %v1933
  %v2014 = vsub.f32 %v1854, %v1934
  %v2015 = vsub.f32 %v1855, %v1935
  %v2016 = vsub.f32 %v1856, %v1936
  %v2017 = vsub.f32 %v1857, %v1937
  %v2018 = vsub.f32 %v1858, %v1938
  %v2019 = vsub.f32 %v1859, %v1939
  %v2020 = vsub.f32 %v1860, %v1940
  %v2021 = vsub.f32 %v1861, %v1941
  %v2022 = vsub.f32 %v1862, %v1942
  %v2023 = vsub.f32 %v1863, %v1943
  %v2024 = vsub.f32 %v1864, %v1944
  %v2025 = vsub.f32 %v1865, %v1945
  %v2026 = vsub.f32 %v1866, %v1946
  %v2027 = vsub.f32 %v1867, %v1947
  %v2028 = vsub.f32 %v1868, %v1948
  %v2029 = vsub.f32 %v1869, %v1949
  %v2030 = vsub.f32 %v1870, %v1950
  %v2031 = vsub.f32 %v1871, %v1951
  %v2032 = vmul.f32 %v1952, %v1952
  %v2033 = vmul.f32 %v1953, %v1953
  %v2034 = vmul.f32 %v1954, %v1954
  %v2035 = vmul.f32 %v1955, %v1955
  %v2036 = vmul.f32 %v1956, %v1956
  %v2037 = vmul.f32 %v1957, %v1957
  %v2038 = vmul.f32 %v1958, %v1958
  %v2039 = vmul.f32 %v1959, %v1959
  %v2040 = vmul.f32 %v1960, %v1960
  %v2041 = vmul.f32 %v1961, %v1961
  %v2042 = vmul.f32 %v1962, %v1962
  %v2043 = vmul.f32 %v1963, %v1963
  %v2044 = vmul.f32 %v1964, %v1964
  %v2045 = vmul.f32 %v1965, %v1965
  %v2046 = vmul.f32 %v1966, %v1966
  %v2047 = vmul.f32 %v1967, %v1967
  %v2048 = vmul.f32 %v1968, %v1968
  %v2049 = vmul.f32 %v1969, %v1969
  %v2050 = vmul.f32 %v1970, %v1970
  %v2051 = vmul.f32 %v1971, %v1971
  %v2052 = vmul.f32 %v1972, %v1972
  %v2053 = vmul.f32 %v1973, %v1973
  %v2054 = vmul.f32 %v1974, %v1974
  %v2055 = vmul.f32 %v1975, %v1975
  %v2056 = vmul.f32 %v1976, %v1976
  %v2057 = vmul.f32 %v1977, %v1977
  %v2058 = vmul.f32 %v1978, %v1978
  %v2059 = vmul.f32 %v1979, %v1979
  %v2060 = vmul.f32 %v1980, %v1980
  %v2061 = vmul.f32 %v1981, %v1981
  %v2062 = vmul.f32 %v1982, %v1982
  %v2063 = vmul.f32 %v1983, %v1983
  %v2064 = vmul.f32 %v1984, %v1984
  %v2065 = vmul.f32 %v1985, %v1985
  %v2066 = vmul.f32 %v1986, %v1986
  %v2067 = vmul.f32 %v1987, %v1987
  %v2068 = vmul.f32 %v1988, %v1988
  %v2069 = vmul.f32 %v1989, %v1989
  %v2070 = vmul.f32 %v1990, %v1990
  %v2071 = vmul.f32 %v1991, %v1991
  %v2072 = vmul.f32 %v1992, %v1992
  %v2073 = vmul.f32 %v1993, %v1993
  %v2074 = vmul.f32 %v1994, %v1994
  %v2075 = vmul.f32 %v1995, %v1995
  %v2076 = vmul.f32 %v1996, %v1996
  %v2077 = vmul.f32 %v1997, %v1997
  %v2078 = vmul.f32 %v1998, %v1998
  %v2079 = vmul.f32 %v1999, %v1999
  %v2080 = vmul.f32 %v2000, %v2000
  %v2081 = vmul.f32 %v2001, %v2001
  %v2082 = vmul.f32 %v2002, %v2002
  %v2083 = vmul.f32 %v2003, %v2003
  %v2084 = vmul.f32 %v2004, %v2004
  %v2085 = vmul.f32 %v2005, %v2005
  %v2086 = vmul.f32 %v2006, %v2006
  %v2087 = vmul.f32 %v2007, %v2007
  %v2088 = vmul.f32 %v2008, %v2008
  %v2089 = vmul.f32 %v2009, %v2009
  %v2090 = vmul.f32 %v2010, %v2010
  %v2091 = vmul.f32 %v2011, %v2011
  %v2092 = vmul.f32 %v2012, %v2012
  %v2093 = vmul.f32 %v2013, %v2013
  %v2094 = vmul.f32 %v2014, %v2014
  %v2095 = vmul.f32 %v2015, %v2015
  %v2096 = vmul.f32 %v2016, %v2016
  %v2097 = vmul.f32 %v2017, %v2017
  %v2098 = vmul.f32 %v2018, %v2018
  %v2099 = vmul.f32 %v2019, %v2019
  %v2100 = vmul.f32 %v2020, %v2020
  %v2101 = vmul.f32 %v2021, %v2021
  %v2102 = vmul.f32 %v2022, %v2022
  %v2103 = vmul.f32 %v2023, %v2023
  %v2104 = vmul.f32 %v2024, %v2024
  %v2105 = vmul.f32 %v2025, %v2025
  %v2106 = vmul.f32 %v2026, %v2026
  %v2107 = vmul.f32 %v2027, %v2027
  %v2108 = vmul.f32 %v2028, %v2028
  %v2109 = vmul.f32 %v2029, %v2029
  %v2110 = vmul.f32 %v2030, %v2030
  %v2111 = vmul.f32 %v2031, %v2031
  %v2112 = vld [vmem:[%s86] sm:$0xff]
  %v2113 = vld [vmem:[%s86 + $0x8] sm:$0xff]
  %v2114 = vld [vmem:[%s86 + $0x10] sm:$0xff]
  %v2115 = vld [vmem:[%s86 + $0x18] sm:$0xff]
  %v2116 = vld [vmem:[%s86 + $0x20] sm:$0xff]
  %v2117 = vld [vmem:[%s86 + $0x28] sm:$0xff]
  %v2118 = vld [vmem:[%s86 + $0x30] sm:$0xff]
  %v2119 = vld [vmem:[%s86 + $0x38] sm:$0xff]
  %v2120 = vld [vmem:[%s86 + $0x40] sm:$0xff]
  %v2121 = vld [vmem:[%s86 + $0x48] sm:$0xff]
  %v2122 = vld [vmem:[%s86 + $0x50] sm:$0xff]
  %v2123 = vld [vmem:[%s86 + $0x58] sm:$0xff]
  %v2124 = vld [vmem:[%s86 + $0x60] sm:$0xff]
  %v2125 = vld [vmem:[%s86 + $0x68] sm:$0xff]
  %v2126 = vld [vmem:[%s86 + $0x70] sm:$0xff]
  %v2127 = vld [vmem:[%s86 + $0x78] sm:$0xff]
  %v2128 = vld [vmem:[%s86 + $0x80] sm:$0xff]
  %v2129 = vld [vmem:[%s86 + $0x88] sm:$0xff]
  %v2130 = vld [vmem:[%s86 + $0x90] sm:$0xff]
  %v2131 = vld [vmem:[%s86 + $0x98] sm:$0xff]
  %v2132 = vld [vmem:[%s86 + $0xa0] sm:$0xff]
  %v2133 = vld [vmem:[%s86 + $0xa8] sm:$0xff]
  %v2134 = vld [vmem:[%s86 + $0xb0] sm:$0xff]
  %v2135 = vld [vmem:[%s86 + $0xb8] sm:$0xff]
  %v2136 = vld [vmem:[%s86 + $0xc0] sm:$0xff]
  %v2137 = vld [vmem:[%s86 + $0xc8] sm:$0xff]
  %v2138 = vld [vmem:[%s86 + $0xd0] sm:$0xff]
  %v2139 = vld [vmem:[%s86 + $0xd8] sm:$0xff]
  %v2140 = vld [vmem:[%s86 + $0xe0] sm:$0xff]
  %v2141 = vld [vmem:[%s86 + $0xe8] sm:$0xff]
  %v2142 = vld [vmem:[%s86 + $0xf0] sm:$0xff]
  %v2143 = vld [vmem:[%s86 + $0xf8] sm:$0xff]
  %v2144 = vld [vmem:[%s86 + $0x100] sm:$0xff]
  %v2145 = vld [vmem:[%s86 + $0x108] sm:$0xff]
  %v2146 = vld [vmem:[%s86 + $0x110] sm:$0xff]
  %v2147 = vld [vmem:[%s86 + $0x118] sm:$0xff]
  %v2148 = vld [vmem:[%s86 + $0x120] sm:$0xff]
  %v2149 = vld [vmem:[%s86 + $0x128] sm:$0xff]
  %v2150 = vld [vmem:[%s86 + $0x130] sm:$0xff]
  %v2151 = vld [vmem:[%s86 + $0x138] sm:$0xff]
  %v2152 = vld [vmem:[%s86 + $0x140] sm:$0xff]
  %v2153 = vld [vmem:[%s86 + $0x148] sm:$0xff]
  %v2154 = vld [vmem:[%s86 + $0x150] sm:$0xff]
  %v2155 = vld [vmem:[%s86 + $0x158] sm:$0xff]
  %v2156 = vld [vmem:[%s86 + $0x160] sm:$0xff]
  %v2157 = vld [vmem:[%s86 + $0x168] sm:$0xff]
  %v2158 = vld [vmem:[%s86 + $0x170] sm:$0xff]
  %v2159 = vld [vmem:[%s86 + $0x178] sm:$0xff]
  %v2160 = vld [vmem:[%s86 + $0x180] sm:$0xff]
  %v2161 = vld [vmem:[%s86 + $0x188] sm:$0xff]
  %v2162 = vld [vmem:[%s86 + $0x190] sm:$0xff]
  %v2163 = vld [vmem:[%s86 + $0x198] sm:$0xff]
  %v2164 = vld [vmem:[%s86 + $0x1a0] sm:$0xff]
  %v2165 = vld [vmem:[%s86 + $0x1a8] sm:$0xff]
  %v2166 = vld [vmem:[%s86 + $0x1b0] sm:$0xff]
  %v2167 = vld [vmem:[%s86 + $0x1b8] sm:$0xff]
  %v2168 = vld [vmem:[%s86 + $0x1c0] sm:$0xff]
  %v2169 = vld [vmem:[%s86 + $0x1c8] sm:$0xff]
  %v2170 = vld [vmem:[%s86 + $0x1d0] sm:$0xff]
  %v2171 = vld [vmem:[%s86 + $0x1d8] sm:$0xff]
  %v2172 = vld [vmem:[%s86 + $0x1e0] sm:$0xff]
  %v2173 = vld [vmem:[%s86 + $0x1e8] sm:$0xff]
  %v2174 = vld [vmem:[%s86 + $0x1f0] sm:$0xff]
  %v2175 = vld [vmem:[%s86 + $0x1f8] sm:$0xff]
  %v2176 = vld [vmem:[%s86 + $0x200] sm:$0xff]
  %v2177 = vld [vmem:[%s86 + $0x208] sm:$0xff]
  %v2178 = vld [vmem:[%s86 + $0x210] sm:$0xff]
  %v2179 = vld [vmem:[%s86 + $0x218] sm:$0xff]
  %v2180 = vld [vmem:[%s86 + $0x220] sm:$0xff]
  %v2181 = vld [vmem:[%s86 + $0x228] sm:$0xff]
  %v2182 = vld [vmem:[%s86 + $0x230] sm:$0xff]
  %v2183 = vld [vmem:[%s86 + $0x238] sm:$0xff]
  %v2184 = vld [vmem:[%s86 + $0x240] sm:$0xff]
  %v2185 = vld [vmem:[%s86 + $0x248] sm:$0xff]
  %v2186 = vld [vmem:[%s86 + $0x250] sm:$0xff]
  %v2187 = vld [vmem:[%s86 + $0x258] sm:$0xff]
  %v2188 = vld [vmem:[%s86 + $0x260] sm:$0xff]
  %v2189 = vld [vmem:[%s86 + $0x268] sm:$0xff]
  %v2190 = vld [vmem:[%s86 + $0x270] sm:$0xff]
  %v2191 = vld [vmem:[%s86 + $0x278] sm:$0xff]
  %2193 = vset.pattern.permute.xlu0 0
  %2194 = vperm.xlu0 %2193, %v2112
  %v2195 = vpop.permute.xlu0 %2194
  %2198 = vset.pattern.permute.xlu0 0
  %2199 = vperm.xlu0 %2198, %v2113
  %v2200 = vpop.permute.xlu0 %2199
  %2203 = vset.pattern.permute.xlu0 0
  %2204 = vperm.xlu0 %2203, %v2114
  %v2205 = vpop.permute.xlu0 %2204
  %2208 = vset.pattern.permute.xlu0 0
  %2209 = vperm.xlu0 %2208, %v2115
  %v2210 = vpop.permute.xlu0 %2209
  %2213 = vset.pattern.permute.xlu0 0
  %2214 = vperm.xlu0 %2213, %v2116
  %v2215 = vpop.permute.xlu0 %2214
  %2218 = vset.pattern.permute.xlu0 0
  %2219 = vperm.xlu0 %2218, %v2117
  %v2220 = vpop.permute.xlu0 %2219
  %2223 = vset.pattern.permute.xlu0 0
  %2224 = vperm.xlu0 %2223, %v2118
  %v2225 = vpop.permute.xlu0 %2224
  %2228 = vset.pattern.permute.xlu0 0
  %2229 = vperm.xlu0 %2228, %v2119
  %v2230 = vpop.permute.xlu0 %2229
  %2233 = vset.pattern.permute.xlu0 0
  %2234 = vperm.xlu0 %2233, %v2120
  %v2235 = vpop.permute.xlu0 %2234
  %2238 = vset.pattern.permute.xlu0 0
  %2239 = vperm.xlu0 %2238, %v2121
  %v2240 = vpop.permute.xlu0 %2239
  %2243 = vset.pattern.permute.xlu0 0
  %2244 = vperm.xlu0 %2243, %v2122
  %v2245 = vpop.permute.xlu0 %2244
  %2248 = vset.pattern.permute.xlu0 0
  %2249 = vperm.xlu0 %2248, %v2123
  %v2250 = vpop.permute.xlu0 %2249
  %2253 = vset.pattern.permute.xlu0 0
  %2254 = vperm.xlu0 %2253, %v2124
  %v2255 = vpop.permute.xlu0 %2254
  %2258 = vset.pattern.permute.xlu0 0
  %2259 = vperm.xlu0 %2258, %v2125
  %v2260 = vpop.permute.xlu0 %2259
  %2263 = vset.pattern.permute.xlu0 0
  %2264 = vperm.xlu0 %2263, %v2126
  %v2265 = vpop.permute.xlu0 %2264
  %2268 = vset.pattern.permute.xlu0 0
  %2269 = vperm.xlu0 %2268, %v2127
  %v2270 = vpop.permute.xlu0 %2269
  %2273 = vset.pattern.permute.xlu0 0
  %2274 = vperm.xlu0 %2273, %v2128
  %v2275 = vpop.permute.xlu0 %2274
  %2278 = vset.pattern.permute.xlu0 0
  %2279 = vperm.xlu0 %2278, %v2129
  %v2280 = vpop.permute.xlu0 %2279
  %2283 = vset.pattern.permute.xlu0 0
  %2284 = vperm.xlu0 %2283, %v2130
  %v2285 = vpop.permute.xlu0 %2284
  %2288 = vset.pattern.permute.xlu0 0
  %2289 = vperm.xlu0 %2288, %v2131
  %v2290 = vpop.permute.xlu0 %2289
  %2293 = vset.pattern.permute.xlu0 0
  %2294 = vperm.xlu0 %2293, %v2132
  %v2295 = vpop.permute.xlu0 %2294
  %2298 = vset.pattern.permute.xlu0 0
  %2299 = vperm.xlu0 %2298, %v2133
  %v2300 = vpop.permute.xlu0 %2299
  %2303 = vset.pattern.permute.xlu0 0
  %2304 = vperm.xlu0 %2303, %v2134
  %v2305 = vpop.permute.xlu0 %2304
  %2308 = vset.pattern.permute.xlu0 0
  %2309 = vperm.xlu0 %2308, %v2135
  %v2310 = vpop.permute.xlu0 %2309
  %2313 = vset.pattern.permute.xlu0 0
  %2314 = vperm.xlu0 %2313, %v2136
  %v2315 = vpop.permute.xlu0 %2314
  %2318 = vset.pattern.permute.xlu0 0
  %2319 = vperm.xlu0 %2318, %v2137
  %v2320 = vpop.permute.xlu0 %2319
  %2323 = vset.pattern.permute.xlu0 0
  %2324 = vperm.xlu0 %2323, %v2138
  %v2325 = vpop.permute.xlu0 %2324
  %2328 = vset.pattern.permute.xlu0 0
  %2329 = vperm.xlu0 %2328, %v2139
  %v2330 = vpop.permute.xlu0 %2329
  %2333 = vset.pattern.permute.xlu0 0
  %2334 = vperm.xlu0 %2333, %v2140
  %v2335 = vpop.permute.xlu0 %2334
  %2338 = vset.pattern.permute.xlu0 0
  %2339 = vperm.xlu0 %2338, %v2141
  %v2340 = vpop.permute.xlu0 %2339
  %2343 = vset.pattern.permute.xlu0 0
  %2344 = vperm.xlu0 %2343, %v2142
  %v2345 = vpop.permute.xlu0 %2344
  %2348 = vset.pattern.permute.xlu0 0
  %2349 = vperm.xlu0 %2348, %v2143
  %v2350 = vpop.permute.xlu0 %2349
  %2353 = vset.pattern.permute.xlu0 0
  %2354 = vperm.xlu0 %2353, %v2144
  %v2355 = vpop.permute.xlu0 %2354
  %2358 = vset.pattern.permute.xlu0 0
  %2359 = vperm.xlu0 %2358, %v2145
  %v2360 = vpop.permute.xlu0 %2359
  %2363 = vset.pattern.permute.xlu0 0
  %2364 = vperm.xlu0 %2363, %v2146
  %v2365 = vpop.permute.xlu0 %2364
  %2368 = vset.pattern.permute.xlu0 0
  %2369 = vperm.xlu0 %2368, %v2147
  %v2370 = vpop.permute.xlu0 %2369
  %2373 = vset.pattern.permute.xlu0 0
  %2374 = vperm.xlu0 %2373, %v2148
  %v2375 = vpop.permute.xlu0 %2374
  %2378 = vset.pattern.permute.xlu0 0
  %2379 = vperm.xlu0 %2378, %v2149
  %v2380 = vpop.permute.xlu0 %2379
  %2383 = vset.pattern.permute.xlu0 0
  %2384 = vperm.xlu0 %2383, %v2150
  %v2385 = vpop.permute.xlu0 %2384
  %2388 = vset.pattern.permute.xlu0 0
  %2389 = vperm.xlu0 %2388, %v2151
  %v2390 = vpop.permute.xlu0 %2389
  %2393 = vset.pattern.permute.xlu0 0
  %2394 = vperm.xlu0 %2393, %v2152
  %v2395 = vpop.permute.xlu0 %2394
  %2398 = vset.pattern.permute.xlu0 0
  %2399 = vperm.xlu0 %2398, %v2153
  %v2400 = vpop.permute.xlu0 %2399
  %2403 = vset.pattern.permute.xlu0 0
  %2404 = vperm.xlu0 %2403, %v2154
  %v2405 = vpop.permute.xlu0 %2404
  %2408 = vset.pattern.permute.xlu0 0
  %2409 = vperm.xlu0 %2408, %v2155
  %v2410 = vpop.permute.xlu0 %2409
  %2413 = vset.pattern.permute.xlu0 0
  %2414 = vperm.xlu0 %2413, %v2156
  %v2415 = vpop.permute.xlu0 %2414
  %2418 = vset.pattern.permute.xlu0 0
  %2419 = vperm.xlu0 %2418, %v2157
  %v2420 = vpop.permute.xlu0 %2419
  %2423 = vset.pattern.permute.xlu0 0
  %2424 = vperm.xlu0 %2423, %v2158
  %v2425 = vpop.permute.xlu0 %2424
  %2428 = vset.pattern.permute.xlu0 0
  %2429 = vperm.xlu0 %2428, %v2159
  %v2430 = vpop.permute.xlu0 %2429
  %2433 = vset.pattern.permute.xlu0 0
  %2434 = vperm.xlu0 %2433, %v2160
  %v2435 = vpop.permute.xlu0 %2434
  %2438 = vset.pattern.permute.xlu0 0
  %2439 = vperm.xlu0 %2438, %v2161
  %v2440 = vpop.permute.xlu0 %2439
  %2443 = vset.pattern.permute.xlu0 0
  %2444 = vperm.xlu0 %2443, %v2162
  %v2445 = vpop.permute.xlu0 %2444
  %2448 = vset.pattern.permute.xlu0 0
  %2449 = vperm.xlu0 %2448, %v2163
  %v2450 = vpop.permute.xlu0 %2449
  %2453 = vset.pattern.permute.xlu0 0
  %2454 = vperm.xlu0 %2453, %v2164
  %v2455 = vpop.permute.xlu0 %2454
  %2458 = vset.pattern.permute.xlu0 0
  %2459 = vperm.xlu0 %2458, %v2165
  %v2460 = vpop.permute.xlu0 %2459
  %2463 = vset.pattern.permute.xlu0 0
  %2464 = vperm.xlu0 %2463, %v2166
  %v2465 = vpop.permute.xlu0 %2464
  %2468 = vset.pattern.permute.xlu0 0
  %2469 = vperm.xlu0 %2468, %v2167
  %v2470 = vpop.permute.xlu0 %2469
  %2473 = vset.pattern.permute.xlu0 0
  %2474 = vperm.xlu0 %2473, %v2168
  %v2475 = vpop.permute.xlu0 %2474
  %2478 = vset.pattern.permute.xlu0 0
  %2479 = vperm.xlu0 %2478, %v2169
  %v2480 = vpop.permute.xlu0 %2479
  %2483 = vset.pattern.permute.xlu0 0
  %2484 = vperm.xlu0 %2483, %v2170
  %v2485 = vpop.permute.xlu0 %2484
  %2488 = vset.pattern.permute.xlu0 0
  %2489 = vperm.xlu0 %2488, %v2171
  %v2490 = vpop.permute.xlu0 %2489
  %2493 = vset.pattern.permute.xlu0 0
  %2494 = vperm.xlu0 %2493, %v2172
  %v2495 = vpop.permute.xlu0 %2494
  %2498 = vset.pattern.permute.xlu0 0
  %2499 = vperm.xlu0 %2498, %v2173
  %v2500 = vpop.permute.xlu0 %2499
  %2503 = vset.pattern.permute.xlu0 0
  %2504 = vperm.xlu0 %2503, %v2174
  %v2505 = vpop.permute.xlu0 %2504
  %2508 = vset.pattern.permute.xlu0 0
  %2509 = vperm.xlu0 %2508, %v2175
  %v2510 = vpop.permute.xlu0 %2509
  %2513 = vset.pattern.permute.xlu0 0
  %2514 = vperm.xlu0 %2513, %v2176
  %v2515 = vpop.permute.xlu0 %2514
  %2518 = vset.pattern.permute.xlu0 0
  %2519 = vperm.xlu0 %2518, %v2177
  %v2520 = vpop.permute.xlu0 %2519
  %2523 = vset.pattern.permute.xlu0 0
  %2524 = vperm.xlu0 %2523, %v2178
  %v2525 = vpop.permute.xlu0 %2524
  %2528 = vset.pattern.permute.xlu0 0
  %2529 = vperm.xlu0 %2528, %v2179
  %v2530 = vpop.permute.xlu0 %2529
  %2533 = vset.pattern.permute.xlu0 0
  %2534 = vperm.xlu0 %2533, %v2180
  %v2535 = vpop.permute.xlu0 %2534
  %2538 = vset.pattern.permute.xlu0 0
  %2539 = vperm.xlu0 %2538, %v2181
  %v2540 = vpop.permute.xlu0 %2539
  %2543 = vset.pattern.permute.xlu0 0
  %2544 = vperm.xlu0 %2543, %v2182
  %v2545 = vpop.permute.xlu0 %2544
  %2548 = vset.pattern.permute.xlu0 0
  %2549 = vperm.xlu0 %2548, %v2183
  %v2550 = vpop.permute.xlu0 %2549
  %2553 = vset.pattern.permute.xlu0 0
  %2554 = vperm.xlu0 %2553, %v2184
  %v2555 = vpop.permute.xlu0 %2554
  %2558 = vset.pattern.permute.xlu0 0
  %2559 = vperm.xlu0 %2558, %v2185
  %v2560 = vpop.permute.xlu0 %2559
  %2563 = vset.pattern.permute.xlu0 0
  %2564 = vperm.xlu0 %2563, %v2186
  %v2565 = vpop.permute.xlu0 %2564
  %2568 = vset.pattern.permute.xlu0 0
  %2569 = vperm.xlu0 %2568, %v2187
  %v2570 = vpop.permute.xlu0 %2569
  %2573 = vset.pattern.permute.xlu0 0
  %2574 = vperm.xlu0 %2573, %v2188
  %v2575 = vpop.permute.xlu0 %2574
  %2578 = vset.pattern.permute.xlu0 0
  %2579 = vperm.xlu0 %2578, %v2189
  %v2580 = vpop.permute.xlu0 %2579
  %2583 = vset.pattern.permute.xlu0 0
  %2584 = vperm.xlu0 %2583, %v2190
  %v2585 = vpop.permute.xlu0 %2584
  %2588 = vset.pattern.permute.xlu0 0
  %2589 = vperm.xlu0 %2588, %v2191
  %v2590 = vpop.permute.xlu0 %2589
  %v2592 = vmul.f32 %v2032, %v2195
  %v2593 = vmul.f32 %v2033, %v2200
  %v2594 = vmul.f32 %v2034, %v2205
  %v2595 = vmul.f32 %v2035, %v2210
  %v2596 = vmul.f32 %v2036, %v2215
  %v2597 = vmul.f32 %v2037, %v2220
  %v2598 = vmul.f32 %v2038, %v2225
  %v2599 = vmul.f32 %v2039, %v2230
  %v2600 = vmul.f32 %v2040, %v2235
  %v2601 = vmul.f32 %v2041, %v2240
  %v2602 = vmul.f32 %v2042, %v2245
  %v2603 = vmul.f32 %v2043, %v2250
  %v2604 = vmul.f32 %v2044, %v2255
  %v2605 = vmul.f32 %v2045, %v2260
  %v2606 = vmul.f32 %v2046, %v2265
  %v2607 = vmul.f32 %v2047, %v2270
  %v2608 = vmul.f32 %v2048, %v2275
  %v2609 = vmul.f32 %v2049, %v2280
  %v2610 = vmul.f32 %v2050, %v2285
  %v2611 = vmul.f32 %v2051, %v2290
  %v2612 = vmul.f32 %v2052, %v2295
  %v2613 = vmul.f32 %v2053, %v2300
  %v2614 = vmul.f32 %v2054, %v2305
  %v2615 = vmul.f32 %v2055, %v2310
  %v2616 = vmul.f32 %v2056, %v2315
  %v2617 = vmul.f32 %v2057, %v2320
  %v2618 = vmul.f32 %v2058, %v2325
  %v2619 = vmul.f32 %v2059, %v2330
  %v2620 = vmul.f32 %v2060, %v2335
  %v2621 = vmul.f32 %v2061, %v2340
  %v2622 = vmul.f32 %v2062, %v2345
  %v2623 = vmul.f32 %v2063, %v2350
  %v2624 = vmul.f32 %v2064, %v2355
  %v2625 = vmul.f32 %v2065, %v2360
  %v2626 = vmul.f32 %v2066, %v2365
  %v2627 = vmul.f32 %v2067, %v2370
  %v2628 = vmul.f32 %v2068, %v2375
  %v2629 = vmul.f32 %v2069, %v2380
  %v2630 = vmul.f32 %v2070, %v2385
  %v2631 = vmul.f32 %v2071, %v2390
  %v2632 = vmul.f32 %v2072, %v2395
  %v2633 = vmul.f32 %v2073, %v2400
  %v2634 = vmul.f32 %v2074, %v2405
  %v2635 = vmul.f32 %v2075, %v2410
  %v2636 = vmul.f32 %v2076, %v2415
  %v2637 = vmul.f32 %v2077, %v2420
  %v2638 = vmul.f32 %v2078, %v2425
  %v2639 = vmul.f32 %v2079, %v2430
  %v2640 = vmul.f32 %v2080, %v2435
  %v2641 = vmul.f32 %v2081, %v2440
  %v2642 = vmul.f32 %v2082, %v2445
  %v2643 = vmul.f32 %v2083, %v2450
  %v2644 = vmul.f32 %v2084, %v2455
  %v2645 = vmul.f32 %v2085, %v2460
  %v2646 = vmul.f32 %v2086, %v2465
  %v2647 = vmul.f32 %v2087, %v2470
  %v2648 = vmul.f32 %v2088, %v2475
  %v2649 = vmul.f32 %v2089, %v2480
  %v2650 = vmul.f32 %v2090, %v2485
  %v2651 = vmul.f32 %v2091, %v2490
  %v2652 = vmul.f32 %v2092, %v2495
  %v2653 = vmul.f32 %v2093, %v2500
  %v2654 = vmul.f32 %v2094, %v2505
  %v2655 = vmul.f32 %v2095, %v2510
  %v2656 = vmul.f32 %v2096, %v2515
  %v2657 = vmul.f32 %v2097, %v2520
  %v2658 = vmul.f32 %v2098, %v2525
  %v2659 = vmul.f32 %v2099, %v2530
  %v2660 = vmul.f32 %v2100, %v2535
  %v2661 = vmul.f32 %v2101, %v2540
  %v2662 = vmul.f32 %v2102, %v2545
  %v2663 = vmul.f32 %v2103, %v2550
  %v2664 = vmul.f32 %v2104, %v2555
  %v2665 = vmul.f32 %v2105, %v2560
  %v2666 = vmul.f32 %v2106, %v2565
  %v2667 = vmul.f32 %v2107, %v2570
  %v2668 = vmul.f32 %v2108, %v2575
  %v2669 = vmul.f32 %v2109, %v2580
  %v2670 = vmul.f32 %v2110, %v2585
  %v2671 = vmul.f32 %v2111, %v2590
  %v2672 = vld [vmem:[#allocation2] sm:$0xff]
  %v2673 = vadd.f32 %v2592, %v2593
  %v2674 = vadd.f32 %v2673, %v2594
  %v2675 = vadd.f32 %v2674, %v2595
  %v2676 = vadd.f32 %v2675, %v2596
  %v2677 = vadd.f32 %v2676, %v2597
  %v2678 = vadd.f32 %v2677, %v2598
  %v2679 = vadd.f32 %v2678, %v2599
  %v2680 = vadd.f32 %v2679, %v2600
  %v2681 = vadd.f32 %v2680, %v2601
  %v2682 = vadd.f32 %v2681, %v2602
  %v2683 = vadd.f32 %v2682, %v2603
  %v2684 = vadd.f32 %v2683, %v2604
  %v2685 = vadd.f32 %v2684, %v2605
  %v2686 = vadd.f32 %v2685, %v2606
  %v2687 = vadd.f32 %v2686, %v2607
  %v2688 = vadd.f32 %v2687, %v2608
  %v2689 = vadd.f32 %v2688, %v2609
  %v2690 = vadd.f32 %v2689, %v2610
  %v2691 = vadd.f32 %v2690, %v2611
  %v2692 = vadd.f32 %v2691, %v2612
  %v2693 = vadd.f32 %v2692, %v2613
  %v2694 = vadd.f32 %v2693, %v2614
  %v2695 = vadd.f32 %v2694, %v2615
  %v2696 = vadd.f32 %v2695, %v2616
  %v2697 = vadd.f32 %v2696, %v2617
  %v2698 = vadd.f32 %v2697, %v2618
  %v2699 = vadd.f32 %v2698, %v2619
  %v2700 = vadd.f32 %v2699, %v2620
  %v2701 = vadd.f32 %v2700, %v2621
  %v2702 = vadd.f32 %v2701, %v2622
  %v2703 = vadd.f32 %v2702, %v2623
  %v2704 = vadd.f32 %v2703, %v2624
  %v2705 = vadd.f32 %v2704, %v2625
  %v2706 = vadd.f32 %v2705, %v2626
  %v2707 = vadd.f32 %v2706, %v2627
  %v2708 = vadd.f32 %v2707, %v2628
  %v2709 = vadd.f32 %v2708, %v2629
  %v2710 = vadd.f32 %v2709, %v2630
  %v2711 = vadd.f32 %v2710, %v2631
  %v2712 = vadd.f32 %v2711, %v2632
  %v2713 = vadd.f32 %v2712, %v2633
  %v2714 = vadd.f32 %v2713, %v2634
  %v2715 = vadd.f32 %v2714, %v2635
  %v2716 = vadd.f32 %v2715, %v2636
  %v2717 = vadd.f32 %v2716, %v2637
  %v2718 = vadd.f32 %v2717, %v2638
  %v2719 = vadd.f32 %v2718, %v2639
  %v2720 = vadd.f32 %v2719, %v2640
  %v2721 = vadd.f32 %v2720, %v2641
  %v2722 = vadd.f32 %v2721, %v2642
  %v2723 = vadd.f32 %v2722, %v2643
  %v2724 = vadd.f32 %v2723, %v2644
  %v2725 = vadd.f32 %v2724, %v2645
  %v2726 = vadd.f32 %v2725, %v2646
  %v2727 = vadd.f32 %v2726, %v2647
  %v2728 = vadd.f32 %v2727, %v2648
  %v2729 = vadd.f32 %v2728, %v2649
  %v2730 = vadd.f32 %v2729, %v2650
  %v2731 = vadd.f32 %v2730, %v2651
  %v2732 = vadd.f32 %v2731, %v2652
  %v2733 = vadd.f32 %v2732, %v2653
  %v2734 = vadd.f32 %v2733, %v2654
  %v2735 = vadd.f32 %v2734, %v2655
  %v2736 = vadd.f32 %v2735, %v2656
  %v2737 = vadd.f32 %v2736, %v2657
  %v2738 = vadd.f32 %v2737, %v2658
  %v2739 = vadd.f32 %v2738, %v2659
  %v2740 = vadd.f32 %v2739, %v2660
  %v2741 = vadd.f32 %v2740, %v2661
  %v2742 = vadd.f32 %v2741, %v2662
  %v2743 = vadd.f32 %v2742, %v2663
  %v2744 = vadd.f32 %v2743, %v2664
  %v2745 = vadd.f32 %v2744, %v2665
  %v2746 = vadd.f32 %v2745, %v2666
  %v2747 = vadd.f32 %v2746, %v2667
  %v2748 = vadd.f32 %v2747, %v2668
  %v2749 = vadd.f32 %v2748, %v2669
  %v2750 = vadd.f32 %v2749, %v2670
  %v2751 = vadd.f32 %v2750, %v2671
  %v2752 = vadd.f32 %v2672, %v2751
  %2753 = vst [vmem:[#allocation2] sm:$0xff] %v2752
  // Predicated region
  $region22: #{_fused_call.1} parent=0 // pred_check
    %p2754 = pneg %p105
  $region23: #{_fused_call.1} parent=0 // pred_check_branch
    %2756 = sbr.rel (%p2754) target = $region25
  $region24: #{_fused_call.1} parent=0 // pred_region
    %v2757 = vld [vmem:[#allocation2] sm:$0xff]
    %2758 = vst [vmem:[%s4] sm:$0xff] %v2757
  $region25: #{_fused_call.1} parent=0 // pred_fallthru
    _
  // Predicated region
  $region26: #{_fused_call.1} parent=0 // pred_check
    _
  $region27: #{_fused_call.1} parent=0 // pred_check_branch
    %2760 = sbr.rel (0) target = $region29
  $region28: #{_fused_call.1} parent=0 // pred_region
    _
  $region29: #{_fused_call.1} parent=0 // pred_fallthru
    _
  // Predicated region
  $region30: #{_fused_call.1} parent=0 // pred_check
    _
  $region31: #{_fused_call.1} parent=0 // pred_check_branch
    %2762 = sbr.rel (0) target = $region33
  $region32: #{_fused_call.1} parent=0 // pred_region
    _
  $region33: #{_fused_call.1} parent=0 // pred_fallthru
    _

</llo_original>
